<compile_context>
chip_gen: v7x
topology: tpu7x:2x2x1
jax: 0.10.0
libtpu: 0.0.40
codegen_flags: <defaults>
</compile_context>

<pallas_src>
import math
import functools

import jax
import jax.numpy as jnp
from jax.experimental import pallas as pl
from jax.experimental.pallas import tpu as pltpu


def _layer_norm(x, gamma, beta, eps=1e-5):
    # x: (TQ, H); gamma/beta: (1, H). Matches torch.nn.LayerNorm (biased var).
    mean = jnp.mean(x, axis=-1, keepdims=True)
    var = jnp.mean((x - mean) ** 2, axis=-1, keepdims=True)
    inv = jax.lax.rsqrt(var + eps)
    return (x - mean) * inv * gamma + beta


def encoder_layer_kernel(
    srcq_ref, srckv_ref, mask_ref,
    wq_ref, bq_ref, wkv_ref, bkv_ref, wo_ref, bo_ref,
    g1_ref, be1_ref,
    w1_ref, b1_ref, w2_ref, b2_ref,
    g2_ref, be2_ref,
    out_ref,
    ctx_ref,                       # VMEM scratch: (block_q, H) bf16 context slab
    *, n_heads: int, head_dim: int,
):
    xq = srcq_ref[0]               # (TQ, H) f32  -- query block (residual path)
    xkv = srckv_ref[0]             # (S, H)  f32  -- full sequence for K/V
    TQ = xq.shape[0]
    S = xkv.shape[0]
    H = n_heads * head_dim

    xq_bf = xq.astype(jnp.bfloat16)
    xkv_bf = xkv.astype(jnp.bfloat16)

    # Q projection (1/sqrt(head_dim) already folded into wq/bq by the wrapper)
    # and fused K|V projection (single MXU pass with N = 2H).
    q = jnp.dot(xq_bf, wq_ref[...],
                preferred_element_type=jnp.float32) + bq_ref[0]        # (TQ, H)
    kv = jnp.dot(xkv_bf, wkv_ref[...],
                 preferred_element_type=jnp.float32) + bkv_ref[0]      # (S, 2H)

    # Additive mask bias (0 = keep, -1e10 = masked), hoisted out of the head loop.
    mask_bias = jnp.broadcast_to(
        (mask_ref[0] - 1.0) * jnp.float32(1e10), (TQ, S))              # (TQ, S)

    # Per-head attention; context goes straight into the VMEM slab (no concat).
    for h in range(n_heads):
        lo = h * head_dim
        qh = q[:, lo:lo + head_dim].astype(jnp.bfloat16)               # (TQ, hd)
        kh = kv[:, lo:lo + head_dim].astype(jnp.bfloat16)              # (S, hd)
        vh = kv[:, H + lo:H + lo + head_dim].astype(jnp.bfloat16)      # (S, hd)

        # energy = q @ k^T as an NT dot_general (no materialized transpose).
        energy = jax.lax.dot_general(
            qh, kh, (((1,), (1,)), ((), ())),
            preferred_element_type=jnp.float32)                        # (TQ, S)
        energy = energy + mask_bias

        # numerically stable softmax over keys, reciprocal-multiply normalize
        m = jnp.max(energy, axis=-1, keepdims=True)
        e = jnp.exp(energy - m)
        denom = jnp.sum(e, axis=-1, keepdims=True)
        attn = e * pl.reciprocal(denom, approx=True)

        ctx_h = jnp.dot(attn.astype(jnp.bfloat16), vh,
                        preferred_element_type=jnp.float32)            # (TQ, hd)
        ctx_ref[:, lo:lo + head_dim] = ctx_h.astype(jnp.bfloat16)

    attn_out = jnp.dot(ctx_ref[...], wo_ref[...],
                       preferred_element_type=jnp.float32) + bo_ref[0]

    # residual + LayerNorm 1 (f32)
    x1 = _layer_norm(xq + attn_out, g1_ref[...], be1_ref[...])

    # position-wise feed-forward (bf16 MXU inputs, f32 accumulation)
    h1 = jnp.dot(x1.astype(jnp.bfloat16), w1_ref[...],
                 preferred_element_type=jnp.float32) + b1_ref[0]
    h1 = jnp.maximum(h1, 0.0)
    ff = jnp.dot(h1.astype(jnp.bfloat16), w2_ref[...],
                 preferred_element_type=jnp.float32) + b2_ref[0]

    # residual + LayerNorm 2 (f32)
    out_ref[0] = _layer_norm(x1 + ff, g2_ref[...], be2_ref[...])


def _prepare_kernel_params(params, n_heads):
    """Pack (f32, torch-equivalent) params for the kernel:
    fold 1/sqrt(head_dim) into the Q projection, fuse K|V, cast matmul weights
    to bf16 (f32 biases / LayerNorm params)."""
    H = params["wq"].shape[0]
    head_dim = H // n_heads
    inv_scale = jnp.float32(1.0 / math.sqrt(head_dim))
    return {
        "wq": (params["wq"] * inv_scale).astype(jnp.bfloat16),
        "bq": (params["bq"] * inv_scale).astype(jnp.float32),
        "wkv": jnp.concatenate([params["wk"], params["wv"]], axis=1).astype(jnp.bfloat16),
        "bkv": jnp.concatenate([params["bk"], params["bv"]], axis=1).astype(jnp.float32),
        "wo": params["wo"].astype(jnp.bfloat16), "bo": params["bo"],
        "ln1_g": params["ln1_g"], "ln1_b": params["ln1_b"],
        "w1": params["w1"].astype(jnp.bfloat16), "b1": params["b1"],
        "w2": params["w2"].astype(jnp.bfloat16), "b2": params["b2"],
        "ln2_g": params["ln2_g"], "ln2_b": params["ln2_b"],
    }


def encoder_layer(src, src_mask, params, *, n_heads, block_q=128):
    """src: (B, S, H) f32, src_mask: (B, 1, S) f32 (0/1)."""
    B, S, H = src.shape
    head_dim = H // n_heads
    pf_dim = params["w1"].shape[1]

    kp = _prepare_kernel_params(params, n_heads)

    block_q = min(block_q, S)
    assert S % block_q == 0, "S must be divisible by the query block size"
    nq = S // block_q

    const = lambda shape: pl.BlockSpec(shape, lambda b, qi: (0, 0))

    in_specs = [
        pl.BlockSpec((1, block_q, H), lambda b, qi: (b, qi, 0)),   # query block
        pl.BlockSpec((1, S, H), lambda b, qi: (b, 0, 0)),          # full seq (K/V)
        pl.BlockSpec((1, 1, S), lambda b, qi: (b, 0, 0)),          # key mask
        const((H, H)), const((1, H)),                              # wq, bq (scaled)
        const((H, 2 * H)), const((1, 2 * H)),                      # wkv, bkv
        const((H, H)), const((1, H)),                              # wo, bo
        const((1, H)), const((1, H)),                              # ln1 gamma, beta
        const((H, pf_dim)), const((1, pf_dim)),                    # w1, b1
        const((pf_dim, H)), const((1, H)),                         # w2, b2
        const((1, H)), const((1, H)),                              # ln2 gamma, beta
    ]

    kernel = functools.partial(
        encoder_layer_kernel, n_heads=n_heads, head_dim=head_dim)

    # ---- advisory cost estimate for the XLA scheduler ----
    flops = int(B * (2 * S * (4 * H * H + 2 * H * pf_dim) + 4 * S * S * H))
    transcendentals = int(B * n_heads * S * S + 4 * B * S)
    weight_bytes = 2 * (H * H + 2 * H * H + H * H + H * pf_dim + pf_dim * H)   # bf16
    bytes_accessed = int(weight_bytes + 2 * B * S * H * 4 + B * S * 4)
    cost = pl.CostEstimate(flops=flops, transcendentals=transcendentals,
                           bytes_accessed=bytes_accessed)

    # ---- explicit VMEM budget (double-buffered blocks + in-kernel temporaries) ----
    block_bytes = 2 * (block_q * H * 4 + S * H * 4 + S * 4
                       + weight_bytes + block_q * H * 4)
    block_bytes += (S * 2 * H + 4 * block_q * H
                    + 3 * block_q * S + 2 * block_q * pf_dim) * 4
    vmem_limit = int(min(max(2 * block_bytes, 8 * 1024 * 1024), 48 * 1024 * 1024))

    return pl.pallas_call(
        kernel,
        out_shape=jax.ShapeDtypeStruct((B, S, H), jnp.float32),
        grid_spec=pltpu.PrefetchScalarGridSpec(
            num_scalar_prefetch=0,
            grid=(B, nq),
            in_specs=in_specs,
            out_specs=pl.BlockSpec((1, block_q, H), lambda b, qi: (b, qi, 0)),
            scratch_shapes=[pltpu.VMEM((block_q, H), jnp.bfloat16)],
        ),
        compiler_params=pltpu.CompilerParams(
            dimension_semantics=("parallel", "parallel"),
            vmem_limit_bytes=vmem_limit),
        cost_estimate=cost,
    )(
        src, src, src_mask,
        kp["wq"], kp["bq"], kp["wkv"], kp["bkv"], kp["wo"], kp["bo"],
        kp["ln1_g"], kp["ln1_b"],
        kp["w1"], kp["b1"], kp["w2"], kp["b2"],
        kp["ln2_g"], kp["ln2_b"],
    )


def _init_params(key, hid_dim, pf_dim):
    ks = jax.random.split(key, 12)
    def lin(kw, kb, fan_in, fan_out):
        bound = 1.0 / math.sqrt(fan_in)
        # weight stored as (in, out) == torch weight (out, in) transposed
        w = jax.random.uniform(kw, (fan_in, fan_out), jnp.float32, -bound, bound)
        b = jax.random.uniform(kb, (1, fan_out), jnp.float32, -bound, bound)
        return w, b
    wq, bq = lin(ks[0], ks[1], hid_dim, hid_dim)
    wk, bk = lin(ks[2], ks[3], hid_dim, hid_dim)
    wv, bv = lin(ks[4], ks[5], hid_dim, hid_dim)
    wo, bo = lin(ks[6], ks[7], hid_dim, hid_dim)
    w1, b1 = lin(ks[8], ks[9], hid_dim, pf_dim)
    w2, b2 = lin(ks[10], ks[11], pf_dim, hid_dim)
    return {
        "wq": wq, "bq": bq, "wk": wk, "bk": bk, "wv": wv, "bv": bv,
        "wo": wo, "bo": bo,
        "ln1_g": jnp.ones((1, hid_dim), jnp.float32),
        "ln1_b": jnp.zeros((1, hid_dim), jnp.float32),
        "w1": w1, "b1": b1, "w2": w2, "b2": b2,
        "ln2_g": jnp.ones((1, hid_dim), jnp.float32),
        "ln2_b": jnp.zeros((1, hid_dim), jnp.float32),
    }


def _reference(src, src_mask, params, n_heads):
    # Pure-JAX f32 reference of the PyTorch forward (dropout = identity).
    B, S, H = src.shape
    hd = H // n_heads
    q = src @ params["wq"] + params["bq"]
    k = src @ params["wk"] + params["bk"]
    v = src @ params["wv"] + params["bv"]
    def split(t):
        return t.reshape(B, S, n_heads, hd).transpose(0, 2, 1, 3)
    Q, K, V = split(q), split(k), split(v)
    energy = jnp.einsum("bhqd,bhkd->bhqk", Q, K) / math.sqrt(hd)
    mask = src_mask[:, None, :, :]  # (B,1,1,S)
    energy = jnp.where(mask == 0, -1e10, energy)
    attn = jax.nn.softmax(energy, axis=-1)
    ctx = jnp.einsum("bhqk,bhkd->bhqd", attn, V)
    ctx = ctx.transpose(0, 2, 1, 3).reshape(B, S, H)
    attn_out = ctx @ params["wo"] + params["bo"]

    def ln(x, g, b, eps=1e-5):
        m = x.mean(-1, keepdims=True)
        var = ((x - m) ** 2).mean(-1, keepdims=True)
        return (x - m) * jax.lax.rsqrt(var + eps) * g + b

    x1 = ln(src + attn_out, params["ln1_g"], params["ln1_b"])
    h1 = jnp.maximum(x1 @ params["w1"] + params["b1"], 0.0)
    ff = h1 @ params["w2"] + params["b2"]
    return ln(x1 + ff, params["ln2_g"], params["ln2_b"])


if __name__ == "__main__":
    B, S, H, n_heads, pf_dim = 2, 8, 32, 4, 64
    key = jax.random.PRNGKey(0)
    k_src, k_par = jax.random.split(key)

    src = jax.random.normal(k_src, (B, S, H), jnp.float32)
    # mask: first batch fully visible, second batch masks last 2 key positions
    src_mask = jnp.ones((B, 1, S), jnp.float32)
    src_mask = src_mask.at[1, 0, -2:].set(0.0)

    params = _init_params(k_par, H, pf_dim)

    out = encoder_layer(src, src_mask, params, n_heads=n_heads)
    out = jax.block_until_ready(out)

    ref = _reference(src, src_mask, params, n_heads)
    assert out.shape == (B, S, H)
    # bf16 MXU inputs (f32 accumulation) + approx reciprocal => relaxed tolerance
    assert jnp.allclose(out, ref, atol=5e-2, rtol=5e-2), "mismatch vs reference"

    print("KERNEL_OK")
</pallas_src>

<mosaic_0001>
module attributes {stable_mosaic.version = 11 : i64} {
  func.func @encoder_layer_kernel(%arg0: i32, %arg1: i32, %arg2: memref<1x8x32xf32, #tpu.memory_space<vmem>>, %arg3: memref<1x8x32xf32, #tpu.memory_space<vmem>>, %arg4: memref<1x1x8xf32, #tpu.memory_space<vmem>>, %arg5: memref<32x32xbf16, #tpu.memory_space<vmem>>, %arg6: memref<1x32xf32, #tpu.memory_space<vmem>>, %arg7: memref<32x64xbf16, #tpu.memory_space<vmem>>, %arg8: memref<1x64xf32, #tpu.memory_space<vmem>>, %arg9: memref<32x32xbf16, #tpu.memory_space<vmem>>, %arg10: memref<1x32xf32, #tpu.memory_space<vmem>>, %arg11: memref<1x32xf32, #tpu.memory_space<vmem>>, %arg12: memref<1x32xf32, #tpu.memory_space<vmem>>, %arg13: memref<32x64xbf16, #tpu.memory_space<vmem>>, %arg14: memref<1x64xf32, #tpu.memory_space<vmem>>, %arg15: memref<64x32xbf16, #tpu.memory_space<vmem>>, %arg16: memref<1x32xf32, #tpu.memory_space<vmem>>, %arg17: memref<1x32xf32, #tpu.memory_space<vmem>>, %arg18: memref<1x32xf32, #tpu.memory_space<vmem>>, %arg19: memref<1x8x32xf32, #tpu.memory_space<vmem>>, %arg20: memref<8x32xbf16, #tpu.memory_space<vmem>>) attributes {dimension_semantics = [#tpu.dimension_semantics<parallel>, #tpu.dimension_semantics<parallel>], iteration_bounds = array<i64: 2, 1>, scalar_prefetch = 0 : i64, scratch_operands = 1 : i64, tpu.core_type = #tpu.core_type<tc>, window_params = [{transform_indices = @transform_0, window_bounds = array<i64: 1, 8, 32>}, {transform_indices = @transform_1, window_bounds = array<i64: 1, 8, 32>}, {transform_indices = @transform_2, window_bounds = array<i64: 1, 1, 8>}, {pipeline_mode = #tpu.pipeline_mode<synchronous>, transform_indices = @transform_3, window_bounds = array<i64: 32, 32>}, {pipeline_mode = #tpu.pipeline_mode<synchronous>, transform_indices = @transform_4, window_bounds = array<i64: 1, 32>}, {pipeline_mode = #tpu.pipeline_mode<synchronous>, transform_indices = @transform_5, window_bounds = array<i64: 32, 64>}, {pipeline_mode = #tpu.pipeline_mode<synchronous>, transform_indices = @transform_6, window_bounds = array<i64: 1, 64>}, {pipeline_mode = #tpu.pipeline_mode<synchronous>, transform_indices = @transform_7, window_bounds = array<i64: 32, 32>}, {pipeline_mode = #tpu.pipeline_mode<synchronous>, transform_indices = @transform_8, window_bounds = array<i64: 1, 32>}, {pipeline_mode = #tpu.pipeline_mode<synchronous>, transform_indices = @transform_9, window_bounds = array<i64: 1, 32>}, {pipeline_mode = #tpu.pipeline_mode<synchronous>, transform_indices = @transform_10, window_bounds = array<i64: 1, 32>}, {pipeline_mode = #tpu.pipeline_mode<synchronous>, transform_indices = @transform_11, window_bounds = array<i64: 32, 64>}, {pipeline_mode = #tpu.pipeline_mode<synchronous>, transform_indices = @transform_12, window_bounds = array<i64: 1, 64>}, {pipeline_mode = #tpu.pipeline_mode<synchronous>, transform_indices = @transform_13, window_bounds = array<i64: 64, 32>}, {pipeline_mode = #tpu.pipeline_mode<synchronous>, transform_indices = @transform_14, window_bounds = array<i64: 1, 32>}, {pipeline_mode = #tpu.pipeline_mode<synchronous>, transform_indices = @transform_15, window_bounds = array<i64: 1, 32>}, {pipeline_mode = #tpu.pipeline_mode<synchronous>, transform_indices = @transform_16, window_bounds = array<i64: 1, 32>}, {transform_indices = @transform_17, window_bounds = array<i64: 1, 8, 32>}]} {
    %c0 = arith.constant 0 : index
    %c0_0 = arith.constant 0 : index
    %c0_1 = arith.constant 0 : index
    %0 = vector.load %arg2[%c0, %c0_0, %c0_1] : memref<1x8x32xf32, #tpu.memory_space<vmem>>, vector<1x8x32xf32>
    %1 = vector.shape_cast %0 : vector<1x8x32xf32> to vector<8x32xf32>
    %c0_2 = arith.constant 0 : index
    %c0_3 = arith.constant 0 : index
    %c0_4 = arith.constant 0 : index
    %2 = vector.load %arg3[%c0_2, %c0_3, %c0_4] : memref<1x8x32xf32, #tpu.memory_space<vmem>>, vector<1x8x32xf32>
    %3 = vector.shape_cast %2 : vector<1x8x32xf32> to vector<8x32xf32>
    %4 = arith.truncf %1 : vector<8x32xf32> to vector<8x32xbf16>
    %5 = arith.truncf %3 : vector<8x32xf32> to vector<8x32xbf16>
    %c0_5 = arith.constant 0 : index
    %c0_6 = arith.constant 0 : index
    %6 = vector.load %arg5[%c0_5, %c0_6] : memref<32x32xbf16, #tpu.memory_space<vmem>>, vector<32x32xbf16>
    %cst = arith.constant dense<0.000000e+00> : vector<8x32xf32>
    %7 = tpu.matmul %4, %6, %cst {dimension_numbers = #tpu.dot_dimension_numbers<[1], [0], [0], [1], [0, 0, 1, 1], [], []>} : vector<8x32xbf16>, vector<32x32xbf16>, vector<8x32xf32> -> vector<8x32xf32>
    %c0_7 = arith.constant 0 : index
    %c0_8 = arith.constant 0 : index
    %8 = vector.load %arg6[%c0_7, %c0_8] : memref<1x32xf32, #tpu.memory_space<vmem>>, vector<1x32xf32>
    %9 = vector.shape_cast %8 : vector<1x32xf32> to vector<32xf32>
    %10 = vector.shape_cast %9 : vector<32xf32> to vector<1x32xf32>
    %11 = vector.broadcast %10 : vector<1x32xf32> to vector<8x32xf32>
    %12 = arith.addf %7, %11 : vector<8x32xf32>
    %c0_9 = arith.constant 0 : index
    %c0_10 = arith.constant 0 : index
    %13 = vector.load %arg7[%c0_9, %c0_10] : memref<32x64xbf16, #tpu.memory_space<vmem>>, vector<32x64xbf16>
    %cst_11 = arith.constant dense<0.000000e+00> : vector<8x64xf32>
    %14 = tpu.matmul %5, %13, %cst_11 {dimension_numbers = #tpu.dot_dimension_numbers<[1], [0], [0], [1], [0, 0, 1, 1], [], []>} : vector<8x32xbf16>, vector<32x64xbf16>, vector<8x64xf32> -> vector<8x64xf32>
    %c0_12 = arith.constant 0 : index
    %c0_13 = arith.constant 0 : index
    %15 = vector.load %arg8[%c0_12, %c0_13] : memref<1x64xf32, #tpu.memory_space<vmem>>, vector<1x64xf32>
    %16 = vector.shape_cast %15 : vector<1x64xf32> to vector<64xf32>
    %17 = vector.shape_cast %16 : vector<64xf32> to vector<1x64xf32>
    %18 = vector.broadcast %17 : vector<1x64xf32> to vector<8x64xf32>
    %19 = arith.addf %14, %18 : vector<8x64xf32>
    %c0_14 = arith.constant 0 : index
    %c0_15 = arith.constant 0 : index
    %c0_16 = arith.constant 0 : index
    %20 = vector.load %arg4[%c0_14, %c0_15, %c0_16] : memref<1x1x8xf32, #tpu.memory_space<vmem>>, vector<1x1x8xf32>
    %21 = vector.shape_cast %20 : vector<1x1x8xf32> to vector<1x8xf32>
    %cst_17 = arith.constant 1.000000e+00 : f32
    %22 = vector.broadcast %cst_17 : f32 to vector<1x8xf32>
    %23 = arith.subf %21, %22 : vector<1x8xf32>
    %cst_18 = arith.constant 1.000000e+10 : f32
    %24 = vector.broadcast %cst_18 : f32 to vector<1x8xf32>
    %25 = arith.mulf %23, %24 : vector<1x8xf32>
    %26 = vector.shape_cast %25 : vector<1x8xf32> to vector<1x8xf32>
    %27 = vector.broadcast %26 : vector<1x8xf32> to vector<8x8xf32>
    %28 = vector.extract_strided_slice %12 {offsets = [0, 0], sizes = [8, 8], strides = [1, 1]} : vector<8x32xf32> to vector<8x8xf32>
    %29 = arith.truncf %28 : vector<8x8xf32> to vector<8x8xbf16>
    %30 = vector.extract_strided_slice %19 {offsets = [0, 0], sizes = [8, 8], strides = [1, 1]} : vector<8x64xf32> to vector<8x8xf32>
    %31 = arith.truncf %30 : vector<8x8xf32> to vector<8x8xbf16>
    %32 = vector.extract_strided_slice %19 {offsets = [0, 32], sizes = [8, 8], strides = [1, 1]} : vector<8x64xf32> to vector<8x8xf32>
    %33 = arith.truncf %32 : vector<8x8xf32> to vector<8x8xbf16>
    %cst_19 = arith.constant dense<0.000000e+00> : vector<8x8xf32>
    %34 = tpu.matmul %29, %31, %cst_19 {dimension_numbers = #tpu.dot_dimension_numbers<[1], [1], [0], [0], [0, 0, 1, 0], [], []>} : vector<8x8xbf16>, vector<8x8xbf16>, vector<8x8xf32> -> vector<8x8xf32>
    %35 = arith.addf %34, %27 : vector<8x8xf32>
    %cst_20 = arith.constant dense<0xFF800000> : vector<8xf32>
    %36 = vector.multi_reduction <maximumf>, %35, %cst_20 [1] : vector<8x8xf32> to vector<8xf32>
    %37 = vector.shape_cast %36 : vector<8xf32> to vector<8x1xf32>
    %38 = vector.broadcast %37 : vector<8x1xf32> to vector<8x8xf32>
    %39 = arith.subf %35, %38 : vector<8x8xf32>
    %40 = math.exp %39 : vector<8x8xf32>
    %cst_21 = arith.constant dense<0.000000e+00> : vector<8xf32>
    %41 = vector.multi_reduction <add>, %40, %cst_21 [1] : vector<8x8xf32> to vector<8xf32>
    %42 = vector.shape_cast %41 : vector<8xf32> to vector<8x1xf32>
    %43 = tpu.reciprocal %42 {approx = true} : vector<8x1xf32> -> vector<8x1xf32>
    %44 = vector.broadcast %43 : vector<8x1xf32> to vector<8x8xf32>
    %45 = arith.mulf %40, %44 : vector<8x8xf32>
    %46 = arith.truncf %45 : vector<8x8xf32> to vector<8x8xbf16>
    %cst_22 = arith.constant dense<0.000000e+00> : vector<8x8xf32>
    %47 = tpu.matmul %46, %33, %cst_22 {dimension_numbers = #tpu.dot_dimension_numbers<[1], [0], [0], [1], [0, 0, 1, 1], [], []>} : vector<8x8xbf16>, vector<8x8xbf16>, vector<8x8xf32> -> vector<8x8xf32>
    %48 = arith.truncf %47 : vector<8x8xf32> to vector<8x8xbf16>
    %c0_23 = arith.constant 0 : index
    %c0_24 = arith.constant 0 : index
    %49 = vector.load %arg20[%c0_23, %c0_24] : memref<8x32xbf16, #tpu.memory_space<vmem>>, vector<8x8xbf16>
    tpu.vector_store %arg20[%c0_23, %c0_24], %48 {strides = array<i32>} : memref<8x32xbf16, #tpu.memory_space<vmem>>, vector<8x8xbf16>,
    %50 = vector.extract_strided_slice %12 {offsets = [0, 8], sizes = [8, 8], strides = [1, 1]} : vector<8x32xf32> to vector<8x8xf32>
    %51 = arith.truncf %50 : vector<8x8xf32> to vector<8x8xbf16>
    %52 = vector.extract_strided_slice %19 {offsets = [0, 8], sizes = [8, 8], strides = [1, 1]} : vector<8x64xf32> to vector<8x8xf32>
    %53 = arith.truncf %52 : vector<8x8xf32> to vector<8x8xbf16>
    %54 = vector.extract_strided_slice %19 {offsets = [0, 40], sizes = [8, 8], strides = [1, 1]} : vector<8x64xf32> to vector<8x8xf32>
    %55 = arith.truncf %54 : vector<8x8xf32> to vector<8x8xbf16>
    %cst_25 = arith.constant dense<0.000000e+00> : vector<8x8xf32>
    %56 = tpu.matmul %51, %53, %cst_25 {dimension_numbers = #tpu.dot_dimension_numbers<[1], [1], [0], [0], [0, 0, 1, 0], [], []>} : vector<8x8xbf16>, vector<8x8xbf16>, vector<8x8xf32> -> vector<8x8xf32>
    %57 = arith.addf %56, %27 : vector<8x8xf32>
    %cst_26 = arith.constant dense<0xFF800000> : vector<8xf32>
    %58 = vector.multi_reduction <maximumf>, %57, %cst_26 [1] : vector<8x8xf32> to vector<8xf32>
    %59 = vector.shape_cast %58 : vector<8xf32> to vector<8x1xf32>
    %60 = vector.broadcast %59 : vector<8x1xf32> to vector<8x8xf32>
    %61 = arith.subf %57, %60 : vector<8x8xf32>
    %62 = math.exp %61 : vector<8x8xf32>
    %cst_27 = arith.constant dense<0.000000e+00> : vector<8xf32>
    %63 = vector.multi_reduction <add>, %62, %cst_27 [1] : vector<8x8xf32> to vector<8xf32>
    %64 = vector.shape_cast %63 : vector<8xf32> to vector<8x1xf32>
    %65 = tpu.reciprocal %64 {approx = true} : vector<8x1xf32> -> vector<8x1xf32>
    %66 = vector.broadcast %65 : vector<8x1xf32> to vector<8x8xf32>
    %67 = arith.mulf %62, %66 : vector<8x8xf32>
    %68 = arith.truncf %67 : vector<8x8xf32> to vector<8x8xbf16>
    %cst_28 = arith.constant dense<0.000000e+00> : vector<8x8xf32>
    %69 = tpu.matmul %68, %55, %cst_28 {dimension_numbers = #tpu.dot_dimension_numbers<[1], [0], [0], [1], [0, 0, 1, 1], [], []>} : vector<8x8xbf16>, vector<8x8xbf16>, vector<8x8xf32> -> vector<8x8xf32>
    %70 = arith.truncf %69 : vector<8x8xf32> to vector<8x8xbf16>
    %c0_29 = arith.constant 0 : index
    %c8 = arith.constant 8 : index
    %71 = vector.load %arg20[%c0_29, %c8] : memref<8x32xbf16, #tpu.memory_space<vmem>>, vector<8x8xbf16>
    tpu.vector_store %arg20[%c0_29, %c8], %70 {strides = array<i32>} : memref<8x32xbf16, #tpu.memory_space<vmem>>, vector<8x8xbf16>,
    %72 = vector.extract_strided_slice %12 {offsets = [0, 16], sizes = [8, 8], strides = [1, 1]} : vector<8x32xf32> to vector<8x8xf32>
    %73 = arith.truncf %72 : vector<8x8xf32> to vector<8x8xbf16>
    %74 = vector.extract_strided_slice %19 {offsets = [0, 16], sizes = [8, 8], strides = [1, 1]} : vector<8x64xf32> to vector<8x8xf32>
    %75 = arith.truncf %74 : vector<8x8xf32> to vector<8x8xbf16>
    %76 = vector.extract_strided_slice %19 {offsets = [0, 48], sizes = [8, 8], strides = [1, 1]} : vector<8x64xf32> to vector<8x8xf32>
    %77 = arith.truncf %76 : vector<8x8xf32> to vector<8x8xbf16>
    %cst_30 = arith.constant dense<0.000000e+00> : vector<8x8xf32>
    %78 = tpu.matmul %73, %75, %cst_30 {dimension_numbers = #tpu.dot_dimension_numbers<[1], [1], [0], [0], [0, 0, 1, 0], [], []>} : vector<8x8xbf16>, vector<8x8xbf16>, vector<8x8xf32> -> vector<8x8xf32>
    %79 = arith.addf %78, %27 : vector<8x8xf32>
    %cst_31 = arith.constant dense<0xFF800000> : vector<8xf32>
    %80 = vector.multi_reduction <maximumf>, %79, %cst_31 [1] : vector<8x8xf32> to vector<8xf32>
    %81 = vector.shape_cast %80 : vector<8xf32> to vector<8x1xf32>
    %82 = vector.broadcast %81 : vector<8x1xf32> to vector<8x8xf32>
    %83 = arith.subf %79, %82 : vector<8x8xf32>
    %84 = math.exp %83 : vector<8x8xf32>
    %cst_32 = arith.constant dense<0.000000e+00> : vector<8xf32>
    %85 = vector.multi_reduction <add>, %84, %cst_32 [1] : vector<8x8xf32> to vector<8xf32>
    %86 = vector.shape_cast %85 : vector<8xf32> to vector<8x1xf32>
    %87 = tpu.reciprocal %86 {approx = true} : vector<8x1xf32> -> vector<8x1xf32>
    %88 = vector.broadcast %87 : vector<8x1xf32> to vector<8x8xf32>
    %89 = arith.mulf %84, %88 : vector<8x8xf32>
    %90 = arith.truncf %89 : vector<8x8xf32> to vector<8x8xbf16>
    %cst_33 = arith.constant dense<0.000000e+00> : vector<8x8xf32>
    %91 = tpu.matmul %90, %77, %cst_33 {dimension_numbers = #tpu.dot_dimension_numbers<[1], [0], [0], [1], [0, 0, 1, 1], [], []>} : vector<8x8xbf16>, vector<8x8xbf16>, vector<8x8xf32> -> vector<8x8xf32>
    %92 = arith.truncf %91 : vector<8x8xf32> to vector<8x8xbf16>
    %c0_34 = arith.constant 0 : index
    %c16 = arith.constant 16 : index
    %93 = vector.load %arg20[%c0_34, %c16] : memref<8x32xbf16, #tpu.memory_space<vmem>>, vector<8x8xbf16>
    tpu.vector_store %arg20[%c0_34, %c16], %92 {strides = array<i32>} : memref<8x32xbf16, #tpu.memory_space<vmem>>, vector<8x8xbf16>,
    %94 = vector.extract_strided_slice %12 {offsets = [0, 24], sizes = [8, 8], strides = [1, 1]} : vector<8x32xf32> to vector<8x8xf32>
    %95 = arith.truncf %94 : vector<8x8xf32> to vector<8x8xbf16>
    %96 = vector.extract_strided_slice %19 {offsets = [0, 24], sizes = [8, 8], strides = [1, 1]} : vector<8x64xf32> to vector<8x8xf32>
    %97 = arith.truncf %96 : vector<8x8xf32> to vector<8x8xbf16>
    %98 = vector.extract_strided_slice %19 {offsets = [0, 56], sizes = [8, 8], strides = [1, 1]} : vector<8x64xf32> to vector<8x8xf32>
    %99 = arith.truncf %98 : vector<8x8xf32> to vector<8x8xbf16>
    %cst_35 = arith.constant dense<0.000000e+00> : vector<8x8xf32>
    %100 = tpu.matmul %95, %97, %cst_35 {dimension_numbers = #tpu.dot_dimension_numbers<[1], [1], [0], [0], [0, 0, 1, 0], [], []>} : vector<8x8xbf16>, vector<8x8xbf16>, vector<8x8xf32> -> vector<8x8xf32>
    %101 = arith.addf %100, %27 : vector<8x8xf32>
    %cst_36 = arith.constant dense<0xFF800000> : vector<8xf32>
    %102 = vector.multi_reduction <maximumf>, %101, %cst_36 [1] : vector<8x8xf32> to vector<8xf32>
    %103 = vector.shape_cast %102 : vector<8xf32> to vector<8x1xf32>
    %104 = vector.broadcast %103 : vector<8x1xf32> to vector<8x8xf32>
    %105 = arith.subf %101, %104 : vector<8x8xf32>
    %106 = math.exp %105 : vector<8x8xf32>
    %cst_37 = arith.constant dense<0.000000e+00> : vector<8xf32>
    %107 = vector.multi_reduction <add>, %106, %cst_37 [1] : vector<8x8xf32> to vector<8xf32>
    %108 = vector.shape_cast %107 : vector<8xf32> to vector<8x1xf32>
    %109 = tpu.reciprocal %108 {approx = true} : vector<8x1xf32> -> vector<8x1xf32>
    %110 = vector.broadcast %109 : vector<8x1xf32> to vector<8x8xf32>
    %111 = arith.mulf %106, %110 : vector<8x8xf32>
    %112 = arith.truncf %111 : vector<8x8xf32> to vector<8x8xbf16>
    %cst_38 = arith.constant dense<0.000000e+00> : vector<8x8xf32>
    %113 = tpu.matmul %112, %99, %cst_38 {dimension_numbers = #tpu.dot_dimension_numbers<[1], [0], [0], [1], [0, 0, 1, 1], [], []>} : vector<8x8xbf16>, vector<8x8xbf16>, vector<8x8xf32> -> vector<8x8xf32>
    %114 = arith.truncf %113 : vector<8x8xf32> to vector<8x8xbf16>
    %c0_39 = arith.constant 0 : index
    %c24 = arith.constant 24 : index
    %115 = vector.load %arg20[%c0_39, %c24] : memref<8x32xbf16, #tpu.memory_space<vmem>>, vector<8x8xbf16>
    tpu.vector_store %arg20[%c0_39, %c24], %114 {strides = array<i32>} : memref<8x32xbf16, #tpu.memory_space<vmem>>, vector<8x8xbf16>,
    %c0_40 = arith.constant 0 : index
    %c0_41 = arith.constant 0 : index
    %116 = vector.load %arg20[%c0_40, %c0_41] : memref<8x32xbf16, #tpu.memory_space<vmem>>, vector<8x32xbf16>
    %c0_42 = arith.constant 0 : index
    %c0_43 = arith.constant 0 : index
    %117 = vector.load %arg9[%c0_42, %c0_43] : memref<32x32xbf16, #tpu.memory_space<vmem>>, vector<32x32xbf16>
    %cst_44 = arith.constant dense<0.000000e+00> : vector<8x32xf32>
    %118 = tpu.matmul %116, %117, %cst_44 {dimension_numbers = #tpu.dot_dimension_numbers<[1], [0], [0], [1], [0, 0, 1, 1], [], []>} : vector<8x32xbf16>, vector<32x32xbf16>, vector<8x32xf32> -> vector<8x32xf32>
    %c0_45 = arith.constant 0 : index
    %c0_46 = arith.constant 0 : index
    %119 = vector.load %arg10[%c0_45, %c0_46] : memref<1x32xf32, #tpu.memory_space<vmem>>, vector<1x32xf32>
    %120 = vector.shape_cast %119 : vector<1x32xf32> to vector<32xf32>
    %121 = vector.shape_cast %120 : vector<32xf32> to vector<1x32xf32>
    %122 = vector.broadcast %121 : vector<1x32xf32> to vector<8x32xf32>
    %123 = arith.addf %118, %122 : vector<8x32xf32>
    %124 = arith.addf %1, %123 : vector<8x32xf32>
    %c0_47 = arith.constant 0 : index
    %c0_48 = arith.constant 0 : index
    %125 = vector.load %arg11[%c0_47, %c0_48] : memref<1x32xf32, #tpu.memory_space<vmem>>, vector<1x32xf32>
    %c0_49 = arith.constant 0 : index
    %c0_50 = arith.constant 0 : index
    %126 = vector.load %arg12[%c0_49, %c0_50] : memref<1x32xf32, #tpu.memory_space<vmem>>, vector<1x32xf32>
    %cst_51 = arith.constant dense<0.000000e+00> : vector<8xf32>
    %127 = vector.multi_reduction <add>, %124, %cst_51 [1] : vector<8x32xf32> to vector<8xf32>
    %128 = vector.shape_cast %127 : vector<8xf32> to vector<8x1xf32>
    %cst_52 = arith.constant 3.200000e+01 : f32
    %129 = vector.broadcast %cst_52 : f32 to vector<8x1xf32>
    %130 = arith.divf %128, %129 : vector<8x1xf32>
    %131 = vector.broadcast %130 : vector<8x1xf32> to vector<8x32xf32>
    %132 = arith.subf %124, %131 : vector<8x32xf32>
    %133 = arith.mulf %132, %132 : vector<8x32xf32>
    %cst_53 = arith.constant dense<0.000000e+00> : vector<8xf32>
    %134 = vector.multi_reduction <add>, %133, %cst_53 [1] : vector<8x32xf32> to vector<8xf32>
    %135 = vector.shape_cast %134 : vector<8xf32> to vector<8x1xf32>
    %cst_54 = arith.constant 3.200000e+01 : f32
    %136 = vector.broadcast %cst_54 : f32 to vector<8x1xf32>
    %137 = arith.divf %135, %136 : vector<8x1xf32>
    %cst_55 = arith.constant 9.99999974E-6 : f32
    %138 = vector.broadcast %cst_55 : f32 to vector<8x1xf32>
    %139 = arith.addf %137, %138 : vector<8x1xf32>
    %140 = math.rsqrt %139 : vector<8x1xf32>
    %141 = vector.broadcast %130 : vector<8x1xf32> to vector<8x32xf32>
    %142 = arith.subf %124, %141 : vector<8x32xf32>
    %143 = vector.broadcast %140 : vector<8x1xf32> to vector<8x32xf32>
    %144 = arith.mulf %142, %143 : vector<8x32xf32>
    %145 = vector.broadcast %125 : vector<1x32xf32> to vector<8x32xf32>
    %146 = arith.mulf %144, %145 : vector<8x32xf32>
    %147 = vector.broadcast %126 : vector<1x32xf32> to vector<8x32xf32>
    %148 = arith.addf %146, %147 : vector<8x32xf32>
    %149 = arith.truncf %148 : vector<8x32xf32> to vector<8x32xbf16>
    %c0_56 = arith.constant 0 : index
    %c0_57 = arith.constant 0 : index
    %150 = vector.load %arg13[%c0_56, %c0_57] : memref<32x64xbf16, #tpu.memory_space<vmem>>, vector<32x64xbf16>
    %cst_58 = arith.constant dense<0.000000e+00> : vector<8x64xf32>
    %151 = tpu.matmul %149, %150, %cst_58 {dimension_numbers = #tpu.dot_dimension_numbers<[1], [0], [0], [1], [0, 0, 1, 1], [], []>} : vector<8x32xbf16>, vector<32x64xbf16>, vector<8x64xf32> -> vector<8x64xf32>
    %c0_59 = arith.constant 0 : index
    %c0_60 = arith.constant 0 : index
    %152 = vector.load %arg14[%c0_59, %c0_60] : memref<1x64xf32, #tpu.memory_space<vmem>>, vector<1x64xf32>
    %153 = vector.shape_cast %152 : vector<1x64xf32> to vector<64xf32>
    %154 = vector.shape_cast %153 : vector<64xf32> to vector<1x64xf32>
    %155 = vector.broadcast %154 : vector<1x64xf32> to vector<8x64xf32>
    %156 = arith.addf %151, %155 : vector<8x64xf32>
    %cst_61 = arith.constant 0.000000e+00 : f32
    %157 = vector.broadcast %cst_61 : f32 to vector<8x64xf32>
    %158 = arith.maximumf %156, %157 : vector<8x64xf32>
    %159 = arith.truncf %158 : vector<8x64xf32> to vector<8x64xbf16>
    %c0_62 = arith.constant 0 : index
    %c0_63 = arith.constant 0 : index
    %160 = vector.load %arg15[%c0_62, %c0_63] : memref<64x32xbf16, #tpu.memory_space<vmem>>, vector<64x32xbf16>
    %cst_64 = arith.constant dense<0.000000e+00> : vector<8x32xf32>
    %161 = tpu.matmul %159, %160, %cst_64 {dimension_numbers = #tpu.dot_dimension_numbers<[1], [0], [0], [1], [0, 0, 1, 1], [], []>} : vector<8x64xbf16>, vector<64x32xbf16>, vector<8x32xf32> -> vector<8x32xf32>
    %c0_65 = arith.constant 0 : index
    %c0_66 = arith.constant 0 : index
    %162 = vector.load %arg16[%c0_65, %c0_66] : memref<1x32xf32, #tpu.memory_space<vmem>>, vector<1x32xf32>
    %163 = vector.shape_cast %162 : vector<1x32xf32> to vector<32xf32>
    %164 = vector.shape_cast %163 : vector<32xf32> to vector<1x32xf32>
    %165 = vector.broadcast %164 : vector<1x32xf32> to vector<8x32xf32>
    %166 = arith.addf %161, %165 : vector<8x32xf32>
    %167 = arith.addf %148, %166 : vector<8x32xf32>
    %c0_67 = arith.constant 0 : index
    %c0_68 = arith.constant 0 : index
    %168 = vector.load %arg17[%c0_67, %c0_68] : memref<1x32xf32, #tpu.memory_space<vmem>>, vector<1x32xf32>
    %c0_69 = arith.constant 0 : index
    %c0_70 = arith.constant 0 : index
    %169 = vector.load %arg18[%c0_69, %c0_70] : memref<1x32xf32, #tpu.memory_space<vmem>>, vector<1x32xf32>
    %cst_71 = arith.constant dense<0.000000e+00> : vector<8xf32>
    %170 = vector.multi_reduction <add>, %167, %cst_71 [1] : vector<8x32xf32> to vector<8xf32>
    %171 = vector.shape_cast %170 : vector<8xf32> to vector<8x1xf32>
    %cst_72 = arith.constant 3.200000e+01 : f32
    %172 = vector.broadcast %cst_72 : f32 to vector<8x1xf32>
    %173 = arith.divf %171, %172 : vector<8x1xf32>
    %174 = vector.broadcast %173 : vector<8x1xf32> to vector<8x32xf32>
    %175 = arith.subf %167, %174 : vector<8x32xf32>
    %176 = arith.mulf %175, %175 : vector<8x32xf32>
    %cst_73 = arith.constant dense<0.000000e+00> : vector<8xf32>
    %177 = vector.multi_reduction <add>, %176, %cst_73 [1] : vector<8x32xf32> to vector<8xf32>
    %178 = vector.shape_cast %177 : vector<8xf32> to vector<8x1xf32>
    %cst_74 = arith.constant 3.200000e+01 : f32
    %179 = vector.broadcast %cst_74 : f32 to vector<8x1xf32>
    %180 = arith.divf %178, %179 : vector<8x1xf32>
    %cst_75 = arith.constant 9.99999974E-6 : f32
    %181 = vector.broadcast %cst_75 : f32 to vector<8x1xf32>
    %182 = arith.addf %180, %181 : vector<8x1xf32>
    %183 = math.rsqrt %182 : vector<8x1xf32>
    %184 = vector.broadcast %173 : vector<8x1xf32> to vector<8x32xf32>
    %185 = arith.subf %167, %184 : vector<8x32xf32>
    %186 = vector.broadcast %183 : vector<8x1xf32> to vector<8x32xf32>
    %187 = arith.mulf %185, %186 : vector<8x32xf32>
    %188 = vector.broadcast %168 : vector<1x32xf32> to vector<8x32xf32>
    %189 = arith.mulf %187, %188 : vector<8x32xf32>
    %190 = vector.broadcast %169 : vector<1x32xf32> to vector<8x32xf32>
    %191 = arith.addf %189, %190 : vector<8x32xf32>
    %c0_76 = arith.constant 0 : index
    %c0_77 = arith.constant 0 : index
    %c0_78 = arith.constant 0 : index
    %192 = vector.load %arg19[%c0_76, %c0_77, %c0_78] : memref<1x8x32xf32, #tpu.memory_space<vmem>>, vector<1x8x32xf32>
    %193 = vector.shape_cast %192 : vector<1x8x32xf32> to vector<8x32xf32>
    %194 = vector.shape_cast %191 : vector<8x32xf32> to vector<1x8x32xf32>
    tpu.vector_store %arg19[%c0_76, %c0_77, %c0_78], %194 {strides = array<i32>} : memref<1x8x32xf32, #tpu.memory_space<vmem>>, vector<1x8x32xf32>,
    return
  }
  func.func @transform_0(%arg0: i32, %arg1: i32) -> (i32, i32, i32) {
    %c0_i32 = arith.constant 0 : i32
    %c0_i32_0 = arith.constant 0 : i32
    return %arg0, %arg1, %c0_i32 : i32, i32, i32
  }
  func.func @transform_1(%arg0: i32, %arg1: i32) -> (i32, i32, i32) {
    %c0_i32 = arith.constant 0 : i32
    %c0_i32_0 = arith.constant 0 : i32
    %c0_i32_1 = arith.constant 0 : i32
    return %arg0, %c0_i32, %c0_i32_0 : i32, i32, i32
  }
  func.func @transform_2(%arg0: i32, %arg1: i32) -> (i32, i32, i32) {
    %c0_i32 = arith.constant 0 : i32
    %c0_i32_0 = arith.constant 0 : i32
    %c0_i32_1 = arith.constant 0 : i32
    return %arg0, %c0_i32, %c0_i32_0 : i32, i32, i32
  }
  func.func @transform_3(%arg0: i32, %arg1: i32) -> (i32, i32) {
    %c0_i32 = arith.constant 0 : i32
    %c0_i32_0 = arith.constant 0 : i32
    %c0_i32_1 = arith.constant 0 : i32
    return %c0_i32, %c0_i32_0 : i32, i32
  }
  func.func @transform_4(%arg0: i32, %arg1: i32) -> (i32, i32) {
    %c0_i32 = arith.constant 0 : i32
    %c0_i32_0 = arith.constant 0 : i32
    %c0_i32_1 = arith.constant 0 : i32
    return %c0_i32, %c0_i32_0 : i32, i32
  }
  func.func @transform_5(%arg0: i32, %arg1: i32) -> (i32, i32) {
    %c0_i32 = arith.constant 0 : i32
    %c0_i32_0 = arith.constant 0 : i32
    %c0_i32_1 = arith.constant 0 : i32
    return %c0_i32, %c0_i32_0 : i32, i32
  }
  func.func @transform_6(%arg0: i32, %arg1: i32) -> (i32, i32) {
    %c0_i32 = arith.constant 0 : i32
    %c0_i32_0 = arith.constant 0 : i32
    %c0_i32_1 = arith.constant 0 : i32
    return %c0_i32, %c0_i32_0 : i32, i32
  }
  func.func @transform_7(%arg0: i32, %arg1: i32) -> (i32, i32) {
    %c0_i32 = arith.constant 0 : i32
    %c0_i32_0 = arith.constant 0 : i32
    %c0_i32_1 = arith.constant 0 : i32
    return %c0_i32, %c0_i32_0 : i32, i32
  }
  func.func @transform_8(%arg0: i32, %arg1: i32) -> (i32, i32) {
    %c0_i32 = arith.constant 0 : i32
    %c0_i32_0 = arith.constant 0 : i32
    %c0_i32_1 = arith.constant 0 : i32
    return %c0_i32, %c0_i32_0 : i32, i32
  }
  func.func @transform_9(%arg0: i32, %arg1: i32) -> (i32, i32) {
    %c0_i32 = arith.constant 0 : i32
    %c0_i32_0 = arith.constant 0 : i32
    %c0_i32_1 = arith.constant 0 : i32
    return %c0_i32, %c0_i32_0 : i32, i32
  }
  func.func @transform_10(%arg0: i32, %arg1: i32) -> (i32, i32) {
    %c0_i32 = arith.constant 0 : i32
    %c0_i32_0 = arith.constant 0 : i32
    %c0_i32_1 = arith.constant 0 : i32
    return %c0_i32, %c0_i32_0 : i32, i32
  }
  func.func @transform_11(%arg0: i32, %arg1: i32) -> (i32, i32) {
    %c0_i32 = arith.constant 0 : i32
    %c0_i32_0 = arith.constant 0 : i32
    %c0_i32_1 = arith.constant 0 : i32
    return %c0_i32, %c0_i32_0 : i32, i32
  }
  func.func @transform_12(%arg0: i32, %arg1: i32) -> (i32, i32) {
    %c0_i32 = arith.constant 0 : i32
    %c0_i32_0 = arith.constant 0 : i32
    %c0_i32_1 = arith.constant 0 : i32
    return %c0_i32, %c0_i32_0 : i32, i32
  }
  func.func @transform_13(%arg0: i32, %arg1: i32) -> (i32, i32) {
    %c0_i32 = arith.constant 0 : i32
    %c0_i32_0 = arith.constant 0 : i32
    %c0_i32_1 = arith.constant 0 : i32
    return %c0_i32, %c0_i32_0 : i32, i32
  }
  func.func @transform_14(%arg0: i32, %arg1: i32) -> (i32, i32) {
    %c0_i32 = arith.constant 0 : i32
    %c0_i32_0 = arith.constant 0 : i32
    %c0_i32_1 = arith.constant 0 : i32
    return %c0_i32, %c0_i32_0 : i32, i32
  }
  func.func @transform_15(%arg0: i32, %arg1: i32) -> (i32, i32) {
    %c0_i32 = arith.constant 0 : i32
    %c0_i32_0 = arith.constant 0 : i32
    %c0_i32_1 = arith.constant 0 : i32
    return %c0_i32, %c0_i32_0 : i32, i32
  }
  func.func @transform_16(%arg0: i32, %arg1: i32) -> (i32, i32) {
    %c0_i32 = arith.constant 0 : i32
    %c0_i32_0 = arith.constant 0 : i32
    %c0_i32_1 = arith.constant 0 : i32
    return %c0_i32, %c0_i32_0 : i32, i32
  }
  func.func @transform_17(%arg0: i32, %arg1: i32) -> (i32, i32, i32) {
    %c0_i32 = arith.constant 0 : i32
    %c0_i32_0 = arith.constant 0 : i32
    return %arg0, %arg1, %c0_i32 : i32, i32, i32
  }
}

</mosaic_0001>

<llo_original>
// kernel: tpu_custom_call.1
$region0: #{tpu_custom_call.1}
  #allocation0 [shape = 'u32[]', space=smem, size = 0x4, offset = 0x4, fixed_abs, tag = 'smem constant byte address 0x4 - core index']
  #allocation1 [shape = 'u32[144,128]{1,0:T(1,128)}', space=vmem, size = 0x12000, scoped, tag = 'internal scratch']
  #allocation2 [shape = 'bf16[8,32]{1,0:T(8,128)(2,1)}', space=vmem, size = 0x800, scoped, tag = 'scratch operand']
  %s0 = inlined_call_operand.vmem [shape: f32[2,8,32], index: 0, kind: input, shape index: {}]
  %s1 = inlined_call_operand.vmem [shape: f32[2,8,32], index: 1, kind: input, shape index: {}]
  %s2 = inlined_call_operand.vmem [shape: f32[2,1,8], index: 2, kind: input, shape index: {}]
  %s3 = inlined_call_operand.vmem [shape: bf16[32,32], index: 3, kind: input, shape index: {}]
  %s4 = inlined_call_operand.hbm [shape: f32[1,32], index: 4, kind: input, shape index: {}]
  %s5 = inlined_call_operand.hbm [shape: bf16[32,64], index: 5, kind: input, shape index: {}]
  %s6 = inlined_call_operand.hbm [shape: f32[1,64], index: 6, kind: input, shape index: {}]
  %s7 = inlined_call_operand.hbm [shape: bf16[32,32], index: 7, kind: input, shape index: {}]
  %s8 = inlined_call_operand.hbm [shape: f32[1,32], index: 8, kind: input, shape index: {}]
  %s9 = inlined_call_operand.hbm [shape: f32[1,32], index: 9, kind: input, shape index: {}]
  %s10 = inlined_call_operand.vmem [shape: f32[1,32], index: 10, kind: input, shape index: {}]
  %s11 = inlined_call_operand.vmem [shape: bf16[32,64], index: 11, kind: input, shape index: {}]
  %s12 = inlined_call_operand.vmem [shape: f32[1,64], index: 12, kind: input, shape index: {}]
  %s13 = inlined_call_operand.vmem [shape: bf16[64,32], index: 13, kind: input, shape index: {}]
  %s14 = inlined_call_operand.vmem [shape: f32[1,32], index: 14, kind: input, shape index: {}]
  %s15 = inlined_call_operand.vmem [shape: f32[1,32], index: 15, kind: input, shape index: {}]
  %s16 = inlined_call_operand.vmem [shape: f32[1,32], index: 16, kind: input, shape index: {}]
  %s17 = inlined_call_operand.hbm [shape: f32[2,8,32], index: 17, kind: output, shape index: {}]
  %s18 = sld [smem:[#allocation0]]
  $region125: #{tpu_custom_call.1} parent=0
    _
  %s20 = ssub.s32 1, %s18
  %s21 = scalar_select 0, %s20, %s18
  $region1: #{tpu_custom_call.1} parent=0
    #allocation3 [shape = 'u8[512]{0}', space=vmem, size = 0x400, scoped, tag = 'input window, operand 4, single buffered']
    #allocation4 [shape = 's32[2]{0}', space=sflag, size = 0x8, scoped, tag = 'scoped memory for tpu_custom_call.1']
    #allocation5 [shape = 's32[2]{0}', space=sflag, size = 0x8, scoped, tag = 'scoped memory for tpu_custom_call.1']
    #allocation6 [shape = 'u8[8192]{0}', space=vmem, size = 0x2000, scoped, tag = 'input window, operand 5, single buffered']
    #allocation7 [shape = 's32[1]{0}', space=sflag, size = 0x4, scoped, tag = 'scoped memory for tpu_custom_call.1']
    #allocation8 [shape = 'u8[512]{0}', space=vmem, size = 0x400, scoped, tag = 'input window, operand 6, single buffered']
    #allocation9 [shape = 'u8[8192]{0}', space=vmem, size = 0x2000, scoped, tag = 'input window, operand 7, single buffered']
    #allocation10 [shape = 's32[1]{0}', space=sflag, size = 0x4, scoped, tag = 'scoped memory for tpu_custom_call.1']
    #allocation11 [shape = 'u8[512]{0}', space=vmem, size = 0x400, scoped, tag = 'input window, operand 8, single buffered']
    #allocation12 [shape = 'u8[512]{0}', space=vmem, size = 0x400, scoped, tag = 'input window, operand 9, single buffered']
    #allocation13 [shape = 's32[1]{0}', space=sflag, size = 0x4, scoped, tag = 'scoped memory for tpu_custom_call.1']
    #allocation14 [shape = 'u8[8192]{0}', space=vmem, size = 0x2000, scoped, tag = 'output window, operand 0']
    %22 = vsyncpa [#allocation4], 0
    %23 = vsyncpa [#allocation7], 0
    %24 = vsyncpa [#allocation10], 0
    %25 = vsyncpa [#allocation13], 0
    %26 = vsyncpa [#allocation5], 0
    %s27 = scalar_lea.sflag [#allocation5], 1
    %28 = vsyncpa %s27, 0
    loop: start=0, step=1, limit=4
    $region2: #{tpu_custom_call.1} parent=1 // loop_pre_header
      _
    $region3: #{tpu_custom_call.1} parent=1 // loop_header
      %s30 = sphi 0, %s34
      %p31 = scmp.ge.s32.totalorder %s30, 4
      %s37 = sphi 0, %s49
      %s38 = sphi 0, %s45
      %s39 = sphi 0, %s37
      %s40 = sphi 0, %s38
      %s41 = sphi 0, %s39
      %s42 = sphi 0, %s40
      %s54 = sphi 0, %s56
      %s57 = sphi 0, %s54
      %s58 = sphi 0, %s57
      %s74 = sphi 0, %s58
      %s80 = sphi 0, %s82
      %s83 = sphi 0, %s80
      %s84 = sphi 0, %s83
      %s100 = sphi 0, %s84
      %s106 = sphi 0, %s108
      %s109 = sphi 0, %s106
      %s110 = sphi 0, %s109
      %s126 = sphi 0, %s110
      %s130 = sphi 0, %s130
      %s132 = sphi 0, %s130
      %s133 = sphi 0, %s132
      %s147 = sphi 0, %s133
      %s151 = sphi 0, %s151
      %s153 = sphi 0, %s151
      %s154 = sphi 0, %s153
      %s168 = sphi 0, %s154
      %s172 = sphi 0, %s172
      %s174 = sphi 0, %s172
      %s175 = sphi 0, %s174
      %s189 = sphi 0, %s175
      %s193 = sphi 0, %s193
      %s195 = sphi 0, %s193
      %s196 = sphi 0, %s195
      %s210 = sphi 0, %s196
      %s214 = sphi 0, %s214
      %s216 = sphi 0, %s214
      %s217 = sphi 0, %s216
      %s231 = sphi 0, %s217
      %s235 = sphi 0, %s235
      %s237 = sphi 0, %s235
      %s238 = sphi 0, %s237
      %s252 = sphi 0, %s238
      %s256 = sphi 0, %s256
      %s258 = sphi 0, %s256
      %s259 = sphi 0, %s258
      %s273 = sphi 0, %s259
      %s277 = sphi 0, %s277
      %s279 = sphi 0, %s277
      %s280 = sphi 0, %s279
      %s294 = sphi 0, %s280
      %s298 = sphi 0, %s298
      %s300 = sphi 0, %s298
      %s301 = sphi 0, %s300
      %s315 = sphi 0, %s301
      %s319 = sphi 0, %s319
      %s321 = sphi 0, %s319
      %s322 = sphi 0, %s321
      %s336 = sphi 0, %s322
      %s340 = sphi 0, %s340
      %s342 = sphi 0, %s340
      %s343 = sphi 0, %s342
      %s357 = sphi 0, %s343
      %s361 = sphi 0, %s361
      %s363 = sphi 0, %s361
      %s364 = sphi 0, %s363
      %s378 = sphi 0, %s364
      %s382 = sphi 0, %s382
      %s384 = sphi 0, %s382
      %s385 = sphi 0, %s384
      %s399 = sphi 0, %s385
      %s403 = sphi 0, %s403
      %s405 = sphi 0, %s403
      %s406 = sphi 0, %s405
      %s420 = sphi 0, %s406
      %s428 = sphi 0, %s430
      %s431 = sphi 0, %s428
      %s432 = sphi 0, %s431
      %s448 = sphi 0, %s432
    $region4: #{tpu_custom_call.1} parent=1 // loop_header_branch
      %33 = sbr.rel (%p31) target = $region8
    $region5: #{tpu_custom_call.1} parent=1 // loop_body
      %s35 = ssub.s32 %s30, 1
      %s36 = ssub.s32 %s30, 2
      %s43 = sadd.s32 1, %s38
      %p44 = scmp.ge.s32.totalorder %s43, 1
      %s45 = scalar_select %p44, 0, %s43
      %s46 = sadd.s32 1, %s37
      %s47 = scalar_select %p44, %s46, %s37
      %p48 = scmp.ge.s32.totalorder %s47, 2
      %s49 = scalar_select %p48, 0, %s47
      %s50 = ssub.s32 %s37, %s49
      %s51 = ssub.s32 %s38, %s45
      %s52 = sor.u32 %s50, %s51
      %p53 = scmp.eq.s32.totalorder %s52, 0
      %s55 = sadd.s32 %s54, 1
      %s56 = scalar_select %p53, %s54, %s55
      %p59 = pneg %p53
      %p60 = scmp.eq.s32.totalorder %s30, 1
      %p61 = por %p59, %p60
      %p62 = scmp.ne.s32.totalorder %s54, %s57
      %p63 = scmp.eq.s32.totalorder %s30, 0
      %p64 = por %p62, %p63
      %p65 = scmp.ne.s32.totalorder %s54, %s57
      %p66 = scmp.eq.s32.totalorder %s35, 1
      %p67 = por %p65, %p66
      %p68 = scmp.ne.s32.totalorder %s57, %s58
      %p69 = scmp.eq.s32.totalorder %s35, 0
      %p70 = por %p68, %p69
      %p71 = scmp.ne.s32.totalorder %s57, %s58
      %p72 = scmp.eq.s32.totalorder %s36, 1
      %p73 = por %p71, %p72
      %p75 = scmp.ne.s32.totalorder %s58, %s74
      %p76 = scmp.eq.s32.totalorder %s36, 0
      %p77 = por %p75, %p76
      %s78 = ssub.s32 %s37, %s49
      %p79 = scmp.eq.s32.totalorder %s78, 0
      %s81 = sadd.s32 %s80, 1
      %s82 = scalar_select %p79, %s80, %s81
      %p85 = pneg %p79
      %p86 = scmp.eq.s32.totalorder %s30, 1
      %p87 = por %p85, %p86
      %p88 = scmp.ne.s32.totalorder %s80, %s83
      %p89 = scmp.eq.s32.totalorder %s30, 0
      %p90 = por %p88, %p89
      %p91 = scmp.ne.s32.totalorder %s80, %s83
      %p92 = scmp.eq.s32.totalorder %s35, 1
      %p93 = por %p91, %p92
      %p94 = scmp.ne.s32.totalorder %s83, %s84
      %p95 = scmp.eq.s32.totalorder %s35, 0
      %p96 = por %p94, %p95
      %p97 = scmp.ne.s32.totalorder %s83, %s84
      %p98 = scmp.eq.s32.totalorder %s36, 1
      %p99 = por %p97, %p98
      %p101 = scmp.ne.s32.totalorder %s84, %s100
      %p102 = scmp.eq.s32.totalorder %s36, 0
      %p103 = por %p101, %p102
      %s104 = ssub.s32 %s37, %s49
      %p105 = scmp.eq.s32.totalorder %s104, 0
      %s107 = sadd.s32 %s106, 1
      %s108 = scalar_select %p105, %s106, %s107
      %p111 = pneg %p105
      %p112 = scmp.eq.s32.totalorder %s30, 1
      %p113 = por %p111, %p112
      %p114 = scmp.ne.s32.totalorder %s106, %s109
      %p115 = scmp.eq.s32.totalorder %s30, 0
      %p116 = por %p114, %p115
      %p117 = scmp.ne.s32.totalorder %s106, %s109
      %p118 = scmp.eq.s32.totalorder %s35, 1
      %p119 = por %p117, %p118
      %p120 = scmp.ne.s32.totalorder %s109, %s110
      %p121 = scmp.eq.s32.totalorder %s35, 0
      %p122 = por %p120, %p121
      %p123 = scmp.ne.s32.totalorder %s109, %s110
      %p124 = scmp.eq.s32.totalorder %s36, 1
      %p125 = por %p123, %p124
      %p127 = scmp.ne.s32.totalorder %s110, %s126
      %p128 = scmp.eq.s32.totalorder %s36, 0
      %p129 = por %p127, %p128
      %s131 = sadd.s32 %s130, 1
      %p134 = scmp.eq.s32.totalorder %s30, 1
      %p135 = scmp.ne.s32.totalorder %s130, %s132
      %p136 = scmp.eq.s32.totalorder %s30, 0
      %p137 = por %p135, %p136
      %p138 = scmp.ne.s32.totalorder %s130, %s132
      %p139 = scmp.eq.s32.totalorder %s35, 1
      %p140 = por %p138, %p139
      %p141 = scmp.ne.s32.totalorder %s132, %s133
      %p142 = scmp.eq.s32.totalorder %s35, 0
      %p143 = por %p141, %p142
      %p144 = scmp.ne.s32.totalorder %s132, %s133
      %p145 = scmp.eq.s32.totalorder %s36, 1
      %p146 = por %p144, %p145
      %p148 = scmp.ne.s32.totalorder %s133, %s147
      %p149 = scmp.eq.s32.totalorder %s36, 0
      %p150 = por %p148, %p149
      %s152 = sadd.s32 %s151, 1
      %p155 = scmp.eq.s32.totalorder %s30, 1
      %p156 = scmp.ne.s32.totalorder %s151, %s153
      %p157 = scmp.eq.s32.totalorder %s30, 0
      %p158 = por %p156, %p157
      %p159 = scmp.ne.s32.totalorder %s151, %s153
      %p160 = scmp.eq.s32.totalorder %s35, 1
      %p161 = por %p159, %p160
      %p162 = scmp.ne.s32.totalorder %s153, %s154
      %p163 = scmp.eq.s32.totalorder %s35, 0
      %p164 = por %p162, %p163
      %p165 = scmp.ne.s32.totalorder %s153, %s154
      %p166 = scmp.eq.s32.totalorder %s36, 1
      %p167 = por %p165, %p166
      %p169 = scmp.ne.s32.totalorder %s154, %s168
      %p170 = scmp.eq.s32.totalorder %s36, 0
      %p171 = por %p169, %p170
      %s173 = sadd.s32 %s172, 1
      %p176 = scmp.eq.s32.totalorder %s30, 1
      %p177 = scmp.ne.s32.totalorder %s172, %s174
      %p178 = scmp.eq.s32.totalorder %s30, 0
      %p179 = por %p177, %p178
      %p180 = scmp.ne.s32.totalorder %s172, %s174
      %p181 = scmp.eq.s32.totalorder %s35, 1
      %p182 = por %p180, %p181
      %p183 = scmp.ne.s32.totalorder %s174, %s175
      %p184 = scmp.eq.s32.totalorder %s35, 0
      %p185 = por %p183, %p184
      %p186 = scmp.ne.s32.totalorder %s174, %s175
      %p187 = scmp.eq.s32.totalorder %s36, 1
      %p188 = por %p186, %p187
      %p190 = scmp.ne.s32.totalorder %s175, %s189
      %p191 = scmp.eq.s32.totalorder %s36, 0
      %p192 = por %p190, %p191
      %s194 = sadd.s32 %s193, 1
      %p197 = scmp.eq.s32.totalorder %s30, 1
      %p198 = scmp.ne.s32.totalorder %s193, %s195
      %p199 = scmp.eq.s32.totalorder %s30, 0
      %p200 = por %p198, %p199
      %p201 = scmp.ne.s32.totalorder %s193, %s195
      %p202 = scmp.eq.s32.totalorder %s35, 1
      %p203 = por %p201, %p202
      %p204 = scmp.ne.s32.totalorder %s195, %s196
      %p205 = scmp.eq.s32.totalorder %s35, 0
      %p206 = por %p204, %p205
      %p207 = scmp.ne.s32.totalorder %s195, %s196
      %p208 = scmp.eq.s32.totalorder %s36, 1
      %p209 = por %p207, %p208
      %p211 = scmp.ne.s32.totalorder %s196, %s210
      %p212 = scmp.eq.s32.totalorder %s36, 0
      %p213 = por %p211, %p212
      %s215 = sadd.s32 %s214, 1
      %p218 = scmp.eq.s32.totalorder %s30, 1
      %p219 = scmp.ne.s32.totalorder %s214, %s216
      %p220 = scmp.eq.s32.totalorder %s30, 0
      %p221 = por %p219, %p220
      %p222 = scmp.ne.s32.totalorder %s214, %s216
      %p223 = scmp.eq.s32.totalorder %s35, 1
      %p224 = por %p222, %p223
      %p225 = scmp.ne.s32.totalorder %s216, %s217
      %p226 = scmp.eq.s32.totalorder %s35, 0
      %p227 = por %p225, %p226
      %p228 = scmp.ne.s32.totalorder %s216, %s217
      %p229 = scmp.eq.s32.totalorder %s36, 1
      %p230 = por %p228, %p229
      %p232 = scmp.ne.s32.totalorder %s217, %s231
      %p233 = scmp.eq.s32.totalorder %s36, 0
      %p234 = por %p232, %p233
      %s236 = sadd.s32 %s235, 1
      %p239 = scmp.eq.s32.totalorder %s30, 1
      %p240 = scmp.ne.s32.totalorder %s235, %s237
      %p241 = scmp.eq.s32.totalorder %s30, 0
      %p242 = por %p240, %p241
      %p243 = scmp.ne.s32.totalorder %s235, %s237
      %p244 = scmp.eq.s32.totalorder %s35, 1
      %p245 = por %p243, %p244
      %p246 = scmp.ne.s32.totalorder %s237, %s238
      %p247 = scmp.eq.s32.totalorder %s35, 0
      %p248 = por %p246, %p247
      %p249 = scmp.ne.s32.totalorder %s237, %s238
      %p250 = scmp.eq.s32.totalorder %s36, 1
      %p251 = por %p249, %p250
      %p253 = scmp.ne.s32.totalorder %s238, %s252
      %p254 = scmp.eq.s32.totalorder %s36, 0
      %p255 = por %p253, %p254
      %s257 = sadd.s32 %s256, 1
      %p260 = scmp.eq.s32.totalorder %s30, 1
      %p261 = scmp.ne.s32.totalorder %s256, %s258
      %p262 = scmp.eq.s32.totalorder %s30, 0
      %p263 = por %p261, %p262
      %p264 = scmp.ne.s32.totalorder %s256, %s258
      %p265 = scmp.eq.s32.totalorder %s35, 1
      %p266 = por %p264, %p265
      %p267 = scmp.ne.s32.totalorder %s258, %s259
      %p268 = scmp.eq.s32.totalorder %s35, 0
      %p269 = por %p267, %p268
      %p270 = scmp.ne.s32.totalorder %s258, %s259
      %p271 = scmp.eq.s32.totalorder %s36, 1
      %p272 = por %p270, %p271
      %p274 = scmp.ne.s32.totalorder %s259, %s273
      %p275 = scmp.eq.s32.totalorder %s36, 0
      %p276 = por %p274, %p275
      %s278 = sadd.s32 %s277, 1
      %p281 = scmp.eq.s32.totalorder %s30, 1
      %p282 = scmp.ne.s32.totalorder %s277, %s279
      %p283 = scmp.eq.s32.totalorder %s30, 0
      %p284 = por %p282, %p283
      %p285 = scmp.ne.s32.totalorder %s277, %s279
      %p286 = scmp.eq.s32.totalorder %s35, 1
      %p287 = por %p285, %p286
      %p288 = scmp.ne.s32.totalorder %s279, %s280
      %p289 = scmp.eq.s32.totalorder %s35, 0
      %p290 = por %p288, %p289
      %p291 = scmp.ne.s32.totalorder %s279, %s280
      %p292 = scmp.eq.s32.totalorder %s36, 1
      %p293 = por %p291, %p292
      %p295 = scmp.ne.s32.totalorder %s280, %s294
      %p296 = scmp.eq.s32.totalorder %s36, 0
      %p297 = por %p295, %p296
      %s299 = sadd.s32 %s298, 1
      %p302 = scmp.eq.s32.totalorder %s30, 1
      %p303 = scmp.ne.s32.totalorder %s298, %s300
      %p304 = scmp.eq.s32.totalorder %s30, 0
      %p305 = por %p303, %p304
      %p306 = scmp.ne.s32.totalorder %s298, %s300
      %p307 = scmp.eq.s32.totalorder %s35, 1
      %p308 = por %p306, %p307
      %p309 = scmp.ne.s32.totalorder %s300, %s301
      %p310 = scmp.eq.s32.totalorder %s35, 0
      %p311 = por %p309, %p310
      %p312 = scmp.ne.s32.totalorder %s300, %s301
      %p313 = scmp.eq.s32.totalorder %s36, 1
      %p314 = por %p312, %p313
      %p316 = scmp.ne.s32.totalorder %s301, %s315
      %p317 = scmp.eq.s32.totalorder %s36, 0
      %p318 = por %p316, %p317
      %s320 = sadd.s32 %s319, 1
      %p323 = scmp.eq.s32.totalorder %s30, 1
      %p324 = scmp.ne.s32.totalorder %s319, %s321
      %p325 = scmp.eq.s32.totalorder %s30, 0
      %p326 = por %p324, %p325
      %p327 = scmp.ne.s32.totalorder %s319, %s321
      %p328 = scmp.eq.s32.totalorder %s35, 1
      %p329 = por %p327, %p328
      %p330 = scmp.ne.s32.totalorder %s321, %s322
      %p331 = scmp.eq.s32.totalorder %s35, 0
      %p332 = por %p330, %p331
      %p333 = scmp.ne.s32.totalorder %s321, %s322
      %p334 = scmp.eq.s32.totalorder %s36, 1
      %p335 = por %p333, %p334
      %p337 = scmp.ne.s32.totalorder %s322, %s336
      %p338 = scmp.eq.s32.totalorder %s36, 0
      %p339 = por %p337, %p338
      %s341 = sadd.s32 %s340, 1
      %p344 = scmp.eq.s32.totalorder %s30, 1
      %p345 = scmp.ne.s32.totalorder %s340, %s342
      %p346 = scmp.eq.s32.totalorder %s30, 0
      %p347 = por %p345, %p346
      %p348 = scmp.ne.s32.totalorder %s340, %s342
      %p349 = scmp.eq.s32.totalorder %s35, 1
      %p350 = por %p348, %p349
      %p351 = scmp.ne.s32.totalorder %s342, %s343
      %p352 = scmp.eq.s32.totalorder %s35, 0
      %p353 = por %p351, %p352
      %p354 = scmp.ne.s32.totalorder %s342, %s343
      %p355 = scmp.eq.s32.totalorder %s36, 1
      %p356 = por %p354, %p355
      %p358 = scmp.ne.s32.totalorder %s343, %s357
      %p359 = scmp.eq.s32.totalorder %s36, 0
      %p360 = por %p358, %p359
      %s362 = sadd.s32 %s361, 1
      %p365 = scmp.eq.s32.totalorder %s30, 1
      %p366 = scmp.ne.s32.totalorder %s361, %s363
      %p367 = scmp.eq.s32.totalorder %s30, 0
      %p368 = por %p366, %p367
      %p369 = scmp.ne.s32.totalorder %s361, %s363
      %p370 = scmp.eq.s32.totalorder %s35, 1
      %p371 = por %p369, %p370
      %p372 = scmp.ne.s32.totalorder %s363, %s364
      %p373 = scmp.eq.s32.totalorder %s35, 0
      %p374 = por %p372, %p373
      %p375 = scmp.ne.s32.totalorder %s363, %s364
      %p376 = scmp.eq.s32.totalorder %s36, 1
      %p377 = por %p375, %p376
      %p379 = scmp.ne.s32.totalorder %s364, %s378
      %p380 = scmp.eq.s32.totalorder %s36, 0
      %p381 = por %p379, %p380
      %s383 = sadd.s32 %s382, 1
      %p386 = scmp.eq.s32.totalorder %s30, 1
      %p387 = scmp.ne.s32.totalorder %s382, %s384
      %p388 = scmp.eq.s32.totalorder %s30, 0
      %p389 = por %p387, %p388
      %p390 = scmp.ne.s32.totalorder %s382, %s384
      %p391 = scmp.eq.s32.totalorder %s35, 1
      %p392 = por %p390, %p391
      %p393 = scmp.ne.s32.totalorder %s384, %s385
      %p394 = scmp.eq.s32.totalorder %s35, 0
      %p395 = por %p393, %p394
      %p396 = scmp.ne.s32.totalorder %s384, %s385
      %p397 = scmp.eq.s32.totalorder %s36, 1
      %p398 = por %p396, %p397
      %p400 = scmp.ne.s32.totalorder %s385, %s399
      %p401 = scmp.eq.s32.totalorder %s36, 0
      %p402 = por %p400, %p401
      %s404 = sadd.s32 %s403, 1
      %p407 = scmp.eq.s32.totalorder %s30, 1
      %p408 = scmp.ne.s32.totalorder %s403, %s405
      %p409 = scmp.eq.s32.totalorder %s30, 0
      %p410 = por %p408, %p409
      %p411 = scmp.ne.s32.totalorder %s403, %s405
      %p412 = scmp.eq.s32.totalorder %s35, 1
      %p413 = por %p411, %p412
      %p414 = scmp.ne.s32.totalorder %s405, %s406
      %p415 = scmp.eq.s32.totalorder %s35, 0
      %p416 = por %p414, %p415
      %p417 = scmp.ne.s32.totalorder %s405, %s406
      %p418 = scmp.eq.s32.totalorder %s36, 1
      %p419 = por %p417, %p418
      %p421 = scmp.ne.s32.totalorder %s406, %s420
      %p422 = scmp.eq.s32.totalorder %s36, 0
      %p423 = por %p421, %p422
      %s424 = ssub.s32 %s37, %s49
      %s425 = ssub.s32 %s38, %s45
      %s426 = sor.u32 %s424, %s425
      %p427 = scmp.eq.s32.totalorder %s426, 0
      %s429 = sadd.s32 %s428, 1
      %s430 = scalar_select %p427, %s428, %s429
      %p433 = pneg %p427
      %p434 = scmp.eq.s32.totalorder %s30, 1
      %p435 = por %p433, %p434
      %p436 = scmp.ne.s32.totalorder %s428, %s431
      %p437 = scmp.eq.s32.totalorder %s30, 0
      %p438 = por %p436, %p437
      %p439 = scmp.ne.s32.totalorder %s428, %s431
      %p440 = scmp.eq.s32.totalorder %s35, 1
      %p441 = por %p439, %p440
      %p442 = scmp.ne.s32.totalorder %s431, %s432
      %p443 = scmp.eq.s32.totalorder %s35, 0
      %p444 = por %p442, %p443
      %p445 = scmp.ne.s32.totalorder %s431, %s432
      %p446 = scmp.eq.s32.totalorder %s36, 1
      %p447 = por %p445, %p446
      %p449 = scmp.ne.s32.totalorder %s432, %s448
      %p450 = scmp.eq.s32.totalorder %s36, 0
      %p451 = por %p449, %p450
      %p452 = scmp.le.s32.totalorder 1, %s30
      %p453 = scmp.lt.s32.totalorder %s30, 3
      %p454 = pnand %p452, %p453
      %p455 = pneg %p454
      // Predicated region
      $region9: #{tpu_custom_call.1} parent=5 // pred_check
        _
      $region10: #{tpu_custom_call.1} parent=5 // pred_check_branch
        %457 = sbr.rel (%p454) target = $region12
      $region11: #{tpu_custom_call.1} parent=5 // pred_region
        %s458 = ssub.s32 %s30, 1
        // Predicated region
        $region13: #{tpu_custom_call.1} parent=11 // pred_check
          %p459 = pneg %p143
        $region14: #{tpu_custom_call.1} parent=11 // pred_check_branch
          %461 = sbr.rel (%p459) target = $region16
        $region15: #{tpu_custom_call.1} parent=11 // pred_region
          _
        $region16: #{tpu_custom_call.1} parent=11 // pred_fallthru
          _
        // Predicated region
        $region17: #{tpu_custom_call.1} parent=11 // pred_check
          %p462 = pneg %p164
        $region18: #{tpu_custom_call.1} parent=11 // pred_check_branch
          %464 = sbr.rel (%p462) target = $region20
        $region19: #{tpu_custom_call.1} parent=11 // pred_region
          %s466 = ssub.s32 16, 16
          %467 = vsyncadd [#allocation4], %s466
          %s469 = sshll.u32 [#allocation3], 4
          %s470 = int_to_ptr.vmem [resolvable:$true] %s469
          %472 = dma.hbm_to_vmem [thread:$0]  %s4, 16, %s470, [#allocation4]
        $region20: #{tpu_custom_call.1} parent=11 // pred_fallthru
          _
        // Predicated region
        $region21: #{tpu_custom_call.1} parent=11 // pred_check
          %p473 = pneg %p185
        $region22: #{tpu_custom_call.1} parent=11 // pred_check_branch
          %475 = sbr.rel (%p473) target = $region24
        $region23: #{tpu_custom_call.1} parent=11 // pred_region
          %s477 = ssub.s32 256, 256
          %478 = vsyncadd [#allocation7], %s477
          %s479 = sshll.u32 [#allocation6], 4
          %s480 = int_to_ptr.vmem [resolvable:$true] %s479
          %485 = dma.hbm_to_vmem [thread:$0]  %s5, 256, %s480, [#allocation7], 64, 64, 4
        $region24: #{tpu_custom_call.1} parent=11 // pred_fallthru
          _
        // Predicated region
        $region25: #{tpu_custom_call.1} parent=11 // pred_check
          %p486 = pneg %p206
        $region26: #{tpu_custom_call.1} parent=11 // pred_check_branch
          %488 = sbr.rel (%p486) target = $region28
        $region27: #{tpu_custom_call.1} parent=11 // pred_region
          %s490 = ssub.s32 16, 16
          %491 = vsyncadd [#allocation7], %s490
          %s493 = sshll.u32 [#allocation8], 4
          %s494 = int_to_ptr.vmem [resolvable:$true] %s493
          %496 = dma.hbm_to_vmem [thread:$0]  %s6, 16, %s494, [#allocation7]
        $region28: #{tpu_custom_call.1} parent=11 // pred_fallthru
          _
        // Predicated region
        $region29: #{tpu_custom_call.1} parent=11 // pred_check
          %p497 = pneg %p227
        $region30: #{tpu_custom_call.1} parent=11 // pred_check_branch
          %499 = sbr.rel (%p497) target = $region32
        $region31: #{tpu_custom_call.1} parent=11 // pred_region
          %s501 = ssub.s32 256, 256
          %502 = vsyncadd [#allocation10], %s501
          %s503 = sshll.u32 [#allocation9], 4
          %s504 = int_to_ptr.vmem [resolvable:$true] %s503
          %509 = dma.hbm_to_vmem [thread:$0]  %s7, 256, %s504, [#allocation10], 64, 64, 4
        $region32: #{tpu_custom_call.1} parent=11 // pred_fallthru
          _
        // Predicated region
        $region33: #{tpu_custom_call.1} parent=11 // pred_check
          %p510 = pneg %p248
        $region34: #{tpu_custom_call.1} parent=11 // pred_check_branch
          %512 = sbr.rel (%p510) target = $region36
        $region35: #{tpu_custom_call.1} parent=11 // pred_region
          %s514 = ssub.s32 16, 16
          %515 = vsyncadd [#allocation10], %s514
          %s517 = sshll.u32 [#allocation11], 4
          %s518 = int_to_ptr.vmem [resolvable:$true] %s517
          %520 = dma.hbm_to_vmem [thread:$0]  %s8, 16, %s518, [#allocation10]
        $region36: #{tpu_custom_call.1} parent=11 // pred_fallthru
          _
        // Predicated region
        $region37: #{tpu_custom_call.1} parent=11 // pred_check
          %p521 = pneg %p269
        $region38: #{tpu_custom_call.1} parent=11 // pred_check_branch
          %523 = sbr.rel (%p521) target = $region40
        $region39: #{tpu_custom_call.1} parent=11 // pred_region
          %s525 = ssub.s32 16, 16
          %526 = vsyncadd [#allocation13], %s525
          %s528 = sshll.u32 [#allocation12], 4
          %s529 = int_to_ptr.vmem [resolvable:$true] %s528
          %531 = dma.hbm_to_vmem [thread:$0]  %s9, 16, %s529, [#allocation13]
        $region40: #{tpu_custom_call.1} parent=11 // pred_fallthru
          _
        // Predicated region
        $region41: #{tpu_custom_call.1} parent=11 // pred_check
          %p532 = pneg %p290
        $region42: #{tpu_custom_call.1} parent=11 // pred_check_branch
          %534 = sbr.rel (%p532) target = $region44
        $region43: #{tpu_custom_call.1} parent=11 // pred_region
          _
        $region44: #{tpu_custom_call.1} parent=11 // pred_fallthru
          _
        // Predicated region
        $region45: #{tpu_custom_call.1} parent=11 // pred_check
          %p535 = pneg %p311
        $region46: #{tpu_custom_call.1} parent=11 // pred_check_branch
          %537 = sbr.rel (%p535) target = $region48
        $region47: #{tpu_custom_call.1} parent=11 // pred_region
          _
        $region48: #{tpu_custom_call.1} parent=11 // pred_fallthru
          _
        // Predicated region
        $region49: #{tpu_custom_call.1} parent=11 // pred_check
          %p538 = pneg %p332
        $region50: #{tpu_custom_call.1} parent=11 // pred_check_branch
          %540 = sbr.rel (%p538) target = $region52
        $region51: #{tpu_custom_call.1} parent=11 // pred_region
          _
        $region52: #{tpu_custom_call.1} parent=11 // pred_fallthru
          _
        // Predicated region
        $region53: #{tpu_custom_call.1} parent=11 // pred_check
          %p541 = pneg %p353
        $region54: #{tpu_custom_call.1} parent=11 // pred_check_branch
          %543 = sbr.rel (%p541) target = $region56
        $region55: #{tpu_custom_call.1} parent=11 // pred_region
          _
        $region56: #{tpu_custom_call.1} parent=11 // pred_fallthru
          _
        // Predicated region
        $region57: #{tpu_custom_call.1} parent=11 // pred_check
          %p544 = pneg %p374
        $region58: #{tpu_custom_call.1} parent=11 // pred_check_branch
          %546 = sbr.rel (%p544) target = $region60
        $region59: #{tpu_custom_call.1} parent=11 // pred_region
          _
        $region60: #{tpu_custom_call.1} parent=11 // pred_fallthru
          _
        // Predicated region
        $region61: #{tpu_custom_call.1} parent=11 // pred_check
          %p547 = pneg %p395
        $region62: #{tpu_custom_call.1} parent=11 // pred_check_branch
          %549 = sbr.rel (%p547) target = $region64
        $region63: #{tpu_custom_call.1} parent=11 // pred_region
          _
        $region64: #{tpu_custom_call.1} parent=11 // pred_fallthru
          _
        // Predicated region
        $region65: #{tpu_custom_call.1} parent=11 // pred_check
          %p550 = pneg %p416
        $region66: #{tpu_custom_call.1} parent=11 // pred_check_branch
          %552 = sbr.rel (%p550) target = $region68
        $region67: #{tpu_custom_call.1} parent=11 // pred_region
          _
        $region68: #{tpu_custom_call.1} parent=11 // pred_fallthru
          _
      $region12: #{tpu_custom_call.1} parent=5 // pred_fallthru
        _
      %p553 = scmp.lt.s32.totalorder %s30, 2
      // Predicated region
      $region69: #{tpu_custom_call.1} parent=5 // pred_check
        %p554 = pneg %p553
      $region70: #{tpu_custom_call.1} parent=5 // pred_check_branch
        %556 = sbr.rel (%p554) target = $region72
      $region71: #{tpu_custom_call.1} parent=5 // pred_region
        // Predicated region
        $region73: #{tpu_custom_call.1} parent=71 // pred_check
          %p557 = pneg %p64
        $region74: #{tpu_custom_call.1} parent=71 // pred_check_branch
          %559 = sbr.rel (%p557) target = $region76
        $region75: #{tpu_custom_call.1} parent=71 // pred_region
          %p560 = scmp.lt.s32.totalorder %s37, 1
          %s561 = scalar_select %p560, %s37, 1
          %p562 = scmp.lt.s32.totalorder %s38, 0
          %s563 = scalar_select %p562, %s38, 0
          %s564 = sadd.s32 %s563, %s561
          %s565 = smul.addr %s564, 8
          %s566 = scalar_lea.vmem %s0, %s565
        $region76: #{tpu_custom_call.1} parent=71 // pred_fallthru
          _
        // Predicated region
        $region77: #{tpu_custom_call.1} parent=71 // pred_check
          %p567 = pneg %p90
        $region78: #{tpu_custom_call.1} parent=71 // pred_check_branch
          %569 = sbr.rel (%p567) target = $region80
        $region79: #{tpu_custom_call.1} parent=71 // pred_region
          %p570 = scmp.lt.s32.totalorder %s37, 1
          %s571 = scalar_select %p570, %s37, 1
          %s572 = smul.addr %s571, 8
          %s573 = scalar_lea.vmem %s1, %s572
        $region80: #{tpu_custom_call.1} parent=71 // pred_fallthru
          _
        // Predicated region
        $region81: #{tpu_custom_call.1} parent=71 // pred_check
          %p574 = pneg %p116
        $region82: #{tpu_custom_call.1} parent=71 // pred_check_branch
          %576 = sbr.rel (%p574) target = $region84
        $region83: #{tpu_custom_call.1} parent=71 // pred_region
          %p577 = scmp.lt.s32.totalorder %s37, 1
          %s578 = scalar_select %p577, %s37, 1
          %s579 = scalar_lea.vmem %s2, %s578
        $region84: #{tpu_custom_call.1} parent=71 // pred_fallthru
          _
      $region72: #{tpu_custom_call.1} parent=5 // pred_fallthru
        _
      %p580 = scmp.le.s32.totalorder 1, %s30
      %p581 = scmp.lt.s32.totalorder %s30, 3
      %p582 = pnand %p580, %p581
      %p583 = pneg %p582
      // Predicated region
      $region85: #{tpu_custom_call.1} parent=5 // pred_check
        _
      $region86: #{tpu_custom_call.1} parent=5 // pred_check_branch
        %585 = sbr.rel (%p582) target = $region88
      $region87: #{tpu_custom_call.1} parent=5 // pred_region
        %s586 = ssub.s32 %s30, 1
        // Predicated region
        $region89: #{tpu_custom_call.1} parent=87 // pred_check
          %p587 = pneg %p164
        $region90: #{tpu_custom_call.1} parent=87 // pred_check_branch
          %589 = sbr.rel (%p587) target = $region92
        $region91: #{tpu_custom_call.1} parent=87 // pred_region
          %590 = dma.done [#allocation4], 16
        $region92: #{tpu_custom_call.1} parent=87 // pred_fallthru
          _
        // Predicated region
        $region93: #{tpu_custom_call.1} parent=87 // pred_check
          %p591 = pneg %p185
        $region94: #{tpu_custom_call.1} parent=87 // pred_check_branch
          %593 = sbr.rel (%p591) target = $region96
        $region95: #{tpu_custom_call.1} parent=87 // pred_region
          %594 = dma.done [#allocation7], 256
        $region96: #{tpu_custom_call.1} parent=87 // pred_fallthru
          _
        // Predicated region
        $region97: #{tpu_custom_call.1} parent=87 // pred_check
          %p595 = pneg %p206
        $region98: #{tpu_custom_call.1} parent=87 // pred_check_branch
          %597 = sbr.rel (%p595) target = $region100
        $region99: #{tpu_custom_call.1} parent=87 // pred_region
          %598 = dma.done [#allocation7], 16
        $region100: #{tpu_custom_call.1} parent=87 // pred_fallthru
          _
        // Predicated region
        $region101: #{tpu_custom_call.1} parent=87 // pred_check
          %p599 = pneg %p227
        $region102: #{tpu_custom_call.1} parent=87 // pred_check_branch
          %601 = sbr.rel (%p599) target = $region104
        $region103: #{tpu_custom_call.1} parent=87 // pred_region
          %602 = dma.done [#allocation10], 256
        $region104: #{tpu_custom_call.1} parent=87 // pred_fallthru
          _
        // Predicated region
        $region105: #{tpu_custom_call.1} parent=87 // pred_check
          %p603 = pneg %p248
        $region106: #{tpu_custom_call.1} parent=87 // pred_check_branch
          %605 = sbr.rel (%p603) target = $region108
        $region107: #{tpu_custom_call.1} parent=87 // pred_region
          %606 = dma.done [#allocation10], 16
        $region108: #{tpu_custom_call.1} parent=87 // pred_fallthru
          _
        // Predicated region
        $region109: #{tpu_custom_call.1} parent=87 // pred_check
          %p607 = pneg %p269
        $region110: #{tpu_custom_call.1} parent=87 // pred_check_branch
          %609 = sbr.rel (%p607) target = $region112
        $region111: #{tpu_custom_call.1} parent=87 // pred_region
          %610 = dma.done [#allocation13], 16
        $region112: #{tpu_custom_call.1} parent=87 // pred_fallthru
          _
        %p611 = scmp.lt.s32.totalorder %s39, 1
        %s612 = scalar_select %p611, %s39, 1
        %p613 = scmp.lt.s32.totalorder %s40, 0
        %s614 = scalar_select %p613, %s40, 0
        %s615 = sadd.s32 %s614, %s612
        %s616 = smul.addr %s615, 8
        %s617 = scalar_lea.vmem %s0, %s616
        %p618 = pneg %p70
        %p619 = pneg %p67
        %p620 = scmp.lt.s32.totalorder %s39, 1
        %s621 = scalar_select %p620, %s39, 1
        %s622 = smul.addr %s621, 8
        %s623 = scalar_lea.vmem %s1, %s622
        %p624 = pneg %p96
        %p625 = pneg %p93
        %p626 = scmp.lt.s32.totalorder %s39, 1
        %s627 = scalar_select %p626, %s39, 1
        %s628 = scalar_lea.vmem %s2, %s627
        %p629 = pneg %p122
        %p630 = pneg %p119
        %p631 = pneg %p143
        %p632 = pneg %p140
        %p633 = pneg %p164
        %p634 = pneg %p161
        %p635 = pneg %p185
        %p636 = pneg %p182
        %p637 = pneg %p206
        %p638 = pneg %p203
        %p639 = pneg %p227
        %p640 = pneg %p224
        %p641 = pneg %p248
        %p642 = pneg %p245
        %p643 = pneg %p269
        %p644 = pneg %p266
        %p645 = pneg %p290
        %p646 = pneg %p287
        %p647 = pneg %p311
        %p648 = pneg %p308
        %p649 = pneg %p332
        %p650 = pneg %p329
        %p651 = pneg %p353
        %p652 = pneg %p350
        %p653 = pneg %p374
        %p654 = pneg %p371
        %p655 = pneg %p395
        %p656 = pneg %p392
        %p657 = pneg %p416
        %p658 = pneg %p413
        %p659 = pneg %p444
        %p660 = pneg %p441
        %s661 = sand.u32 %s431, 1
        %s662 = scalar_lea.sflag [#allocation5], %s661
        %s663 = sand.u32 %s431, 1
        %s664 = smul.addr %s663, 8
        %s665 = scalar_lea.vmem [#allocation14], %s664
        %p666 = scmp.lt.s32.totalorder %s39, 1
        %s667 = scalar_select %p666, %s39, 1
        %p668 = scmp.lt.s32.totalorder %s40, 0
        %s669 = scalar_select %p668, %s40, 0
        %s670 = sadd.s32 %s669, %s667
        %s671 = smul.addr %s670, 8
        %s672 = scalar_lea.vmem %s0, %s671
        %p673 = scmp.lt.s32.totalorder %s39, 1
        %s674 = scalar_select %p673, %s39, 1
        %s675 = smul.addr %s674, 8
        %s676 = scalar_lea.vmem %s1, %s675
        %p677 = scmp.lt.s32.totalorder %s39, 1
        %s678 = scalar_select %p677, %s39, 1
        %s679 = scalar_lea.vmem %s2, %s678
        %v681 = vld [vmem:[%s672] sm:$0xff]
        %v682 = vld [vmem:[%s676] sm:$0xff]
        %v683 = vpack.c.bf16 %v681, %v681
        %v684 = vpack.c.bf16 %v682, %v682
        %v685 = vld [vmem:[%s3] sm:$0xf]
        %v686 = vld [vmem:[%s3 + $0x4] sm:$0xf]
        %v687 = vld [vmem:[%s3 + $0x8] sm:$0xf]
        %v688 = vld [vmem:[%s3 + $0xc] sm:$0xf]
        %v689 = vld [vmem:[#allocation3] sm:$0x1]
        %v691 = vlaneseq
        %v692 = vshrl.u32 %v691, 7
        %v693 = vsub.s32 0, %v692
        %v694 = vrot.slane %v689, %v693
        %v700 = vunpack.c.l.b16 %v685
        %v701 = vunpack.c.l.b16 %v686
        %v702 = vunpack.c.l.b16 %v687
        %v703 = vunpack.c.l.b16 %v688
        %v704 = vpack.c.b16 %v701, %v700
        %v705 = vpack.c.b16 %v703, %v702
        %vm708 = vcmask 261120
        %v710 = vsel %vm708, %v683, 0
        %712 = vmatprep.subr.bf16.mxu0 0
        %713 = vmatpush1.bf16.msra.mxu0 %v704
        %714 = vmatprep.subr.bf16.mxu0 0
        %715 = vmatpush1.bf16.msra.mxu0 %v705
        %716 = vmatprep.subr.bf16.mxu0 0
        %717 = vmatpush1.bf16.msra.mxu0 0
        %718 = vmatprep.subr.bf16.mxu0 0
        %719 = vmatpush1.bf16.msra.mxu0 0
        %720 = vmatprep.subr.bf16.mxu0 0
        %721 = vmatpush1.bf16.msra.mxu0 0
        %722 = vmatprep.subr.bf16.mxu0 0
        %723 = vmatpush1.bf16.msra.mxu0 0
        %724 = vmatprep.subr.bf16.mxu0 0
        %725 = vmatpush1.bf16.msra.mxu0 0
        %726 = vmatprep.subr.bf16.mxu0 0
        %727 = vmatpush1.bf16.msra.mxu0 0
        %728 = vmatprep.subr.bf16.mxu0 0
        %729 = vmatpush1.bf16.msra.mxu0 0
        %730 = vmatprep.subr.bf16.mxu0 0
        %731 = vmatpush1.bf16.msra.mxu0 0
        %732 = vmatprep.subr.bf16.mxu0 0
        %733 = vmatpush1.bf16.msra.mxu0 0
        %734 = vmatprep.subr.bf16.mxu0 0
        %735 = vmatpush1.bf16.msra.mxu0 0
        %736 = vmatprep.subr.bf16.mxu0 0
        %737 = vmatpush1.bf16.msra.mxu0 0
        %738 = vmatprep.subr.bf16.mxu0 0
        %739 = vmatpush1.bf16.msra.mxu0 0
        %740 = vmatprep.subr.bf16.mxu0 0
        %741 = vmatpush1.bf16.msra.mxu0 0
        %742 = vmatprep.subr.bf16.mxu0 0
        %743 = vmatpush1.bf16.msra.mxu0 0
        %744 = vmatprep.mubr.bf16.mxu0 0
        %745 = vmatmul.mubr.bf16.gmra.mrb[0].mxu0 %v710
        %v746 = vpop.f32.mrb[0].mxu0
        %v747 = vadd.f32 %v694, %v746
        %v748 = vpop.f32.mrb[0].mxu0
        %v749 = vpop.f32.mrb[0].mxu0
        %v750 = vpop.f32.mrb[0].mxu0
        %751 = vdwg.mxu0
        %v752 = vld [vmem:[#allocation6] sm:$0xf]
        %v753 = vld [vmem:[#allocation6 + $0x4] sm:$0xf]
        %v754 = vld [vmem:[#allocation6 + $0x8] sm:$0xf]
        %v755 = vld [vmem:[#allocation6 + $0xc] sm:$0xf]
        %v756 = vld [vmem:[#allocation8] sm:$0x1]
        %v758 = vlaneseq
        %v759 = vshrl.u32 %v758, 7
        %v760 = vsub.s32 0, %v759
        %v761 = vrot.slane %v756, %v760
        %v767 = vunpack.c.l.b16 %v752
        %v768 = vunpack.c.l.b16 %v753
        %v769 = vunpack.c.l.b16 %v754
        %v770 = vunpack.c.l.b16 %v755
        %v771 = vpack.c.b16 %v768, %v767
        %v772 = vpack.c.b16 %v770, %v769
        %v776 = vsel %vm708, %v684, 0
        %778 = vmatprep.subr.bf16.mxu0 0
        %779 = vmatpush1.bf16.msra.mxu0 %v771
        %780 = vmatprep.subr.bf16.mxu0 0
        %781 = vmatpush1.bf16.msra.mxu0 %v772
        %782 = vmatprep.subr.bf16.mxu0 0
        %783 = vmatpush1.bf16.msra.mxu0 0
        %784 = vmatprep.subr.bf16.mxu0 0
        %785 = vmatpush1.bf16.msra.mxu0 0
        %786 = vmatprep.subr.bf16.mxu0 0
        %787 = vmatpush1.bf16.msra.mxu0 0
        %788 = vmatprep.subr.bf16.mxu0 0
        %789 = vmatpush1.bf16.msra.mxu0 0
        %790 = vmatprep.subr.bf16.mxu0 0
        %791 = vmatpush1.bf16.msra.mxu0 0
        %792 = vmatprep.subr.bf16.mxu0 0
        %793 = vmatpush1.bf16.msra.mxu0 0
        %794 = vmatprep.subr.bf16.mxu0 0
        %795 = vmatpush1.bf16.msra.mxu0 0
        %796 = vmatprep.subr.bf16.mxu0 0
        %797 = vmatpush1.bf16.msra.mxu0 0
        %798 = vmatprep.subr.bf16.mxu0 0
        %799 = vmatpush1.bf16.msra.mxu0 0
        %800 = vmatprep.subr.bf16.mxu0 0
        %801 = vmatpush1.bf16.msra.mxu0 0
        %802 = vmatprep.subr.bf16.mxu0 0
        %803 = vmatpush1.bf16.msra.mxu0 0
        %804 = vmatprep.subr.bf16.mxu0 0
        %805 = vmatpush1.bf16.msra.mxu0 0
        %806 = vmatprep.subr.bf16.mxu0 0
        %807 = vmatpush1.bf16.msra.mxu0 0
        %808 = vmatprep.subr.bf16.mxu0 0
        %809 = vmatpush1.bf16.msra.mxu0 0
        %810 = vmatprep.mubr.bf16.mxu0 0
        %811 = vmatmul.mubr.bf16.gmra.mrb[0].mxu0 %v776
        %v812 = vpop.f32.mrb[0].mxu0
        %v813 = vadd.f32 %v761, %v812
        %v814 = vpop.f32.mrb[0].mxu0
        %v815 = vpop.f32.mrb[0].mxu0
        %v816 = vpop.f32.mrb[0].mxu0
        %817 = vdwg.mxu0
        %v818 = vld [vmem:[%s679] sm:$0x1]
        %v819 = vsub.f32 %v818, 1.0
        %v820 = vmul.f32 %v819, 1e+10
        %v822 = vlaneseq
        %v823 = vshrl.u32 %v822, 7
        %v824 = vsub.s32 0, %v823
        %v825 = vrot.slane %v820, %v824
        %v827 = vpack.c.bf16 %v747, %v747
        %v828 = vpack.c.bf16 %v813, %v813
        %vm829 = vcmask 64512
        %v831 = vsel %vm829, %v827, 0
        %v834 = vsel %vm829, %v828, 0
        %836 = vmatprep.subr.bf16.mxu0 0
        %837 = vmatpush1.bf16.xpose.msra.mxu0 %v834
        %838 = vmatprep.subr.bf16.mxu0 0
        %839 = vmatpush1.bf16.xpose.msra.mxu0 0
        %840 = vmatprep.subr.bf16.mxu0 0
        %841 = vmatpush1.bf16.xpose.msra.mxu0 0
        %842 = vmatprep.subr.bf16.mxu0 0
        %843 = vmatpush1.bf16.xpose.msra.mxu0 0
        %844 = vmatprep.subr.bf16.mxu0 0
        %845 = vmatpush1.bf16.xpose.msra.mxu0 0
        %846 = vmatprep.subr.bf16.mxu0 0
        %847 = vmatpush1.bf16.xpose.msra.mxu0 0
        %848 = vmatprep.subr.bf16.mxu0 0
        %849 = vmatpush1.bf16.xpose.msra.mxu0 0
        %850 = vmatprep.subr.bf16.mxu0 0
        %851 = vmatpush1.bf16.xpose.msra.mxu0 0
        %852 = vmatprep.subr.bf16.mxu0 0
        %853 = vmatpush1.bf16.xpose.msra.mxu0 0
        %854 = vmatprep.subr.bf16.mxu0 0
        %855 = vmatpush1.bf16.xpose.msra.mxu0 0
        %856 = vmatprep.subr.bf16.mxu0 0
        %857 = vmatpush1.bf16.xpose.msra.mxu0 0
        %858 = vmatprep.subr.bf16.mxu0 0
        %859 = vmatpush1.bf16.xpose.msra.mxu0 0
        %860 = vmatprep.subr.bf16.mxu0 0
        %861 = vmatpush1.bf16.xpose.msra.mxu0 0
        %862 = vmatprep.subr.bf16.mxu0 0
        %863 = vmatpush1.bf16.xpose.msra.mxu0 0
        %864 = vmatprep.subr.bf16.mxu0 0
        %865 = vmatpush1.bf16.xpose.msra.mxu0 0
        %866 = vmatprep.subr.bf16.mxu0 0
        %867 = vmatpush1.bf16.xpose.msra.mxu0 0
        %868 = vmatprep.mubr.bf16.mxu0 0
        %869 = vmatmul.mubr.bf16.gmra.mrb[0].mxu0 %v831
        %v870 = vpop.f32.mrb[0].mxu0
        %v871 = vadd.f32 %v825, %v870
        %v872 = vpop.f32.mrb[0].mxu0
        %v873 = vpop.f32.mrb[0].mxu0
        %v874 = vpop.f32.mrb[0].mxu0
        %875 = vdwg.mxu0
        %v876 = vsel %vm829, %v871, -inf
        %877 = vmax.xlane.f32.xlu0 %v876
        %v878 = vpop.xlane.xlu0 %877
        %v879 = vsub.f32 %v871, %v878
        %v880 = vmul.f32 %v879, 1.442695
        %v881 = vpow.pop %v880
        %v882 = vsel %vm829, %v881, 0.0
        %883 = vadd.xlane.f32.xlu0 %v882
        %v884 = vpop.xlane.xlu0 %883
        %v885 = vrcp.pop %v884
        %v886 = vmul.f32 %v881, %v885
        %v887 = vpack.c.bf16 %v886, %v886
        %889 = vrot.lane.b32.xlu0 %v828, 96
        %v890 = vpop.permute.xlu0 %889
        %v892 = vsel %vm829, %v887, 0
        %vm894 = vcmask 1043456
        %v896 = vsel %vm894, %v890, 0
        %898 = vmatprep.subr.bf16.mxu0 0
        %899 = vmatpush1.bf16.msra.mxu0 %v896
        %900 = vmatprep.subr.bf16.mxu0 0
        %901 = vmatpush1.bf16.msra.mxu0 0
        %902 = vmatprep.subr.bf16.mxu0 0
        %903 = vmatpush1.bf16.msra.mxu0 0
        %904 = vmatprep.subr.bf16.mxu0 0
        %905 = vmatpush1.bf16.msra.mxu0 0
        %906 = vmatprep.subr.bf16.mxu0 0
        %907 = vmatpush1.bf16.msra.mxu0 0
        %908 = vmatprep.subr.bf16.mxu0 0
        %909 = vmatpush1.bf16.msra.mxu0 0
        %910 = vmatprep.subr.bf16.mxu0 0
        %911 = vmatpush1.bf16.msra.mxu0 0
        %912 = vmatprep.subr.bf16.mxu0 0
        %913 = vmatpush1.bf16.msra.mxu0 0
        %914 = vmatprep.subr.bf16.mxu0 0
        %915 = vmatpush1.bf16.msra.mxu0 0
        %916 = vmatprep.subr.bf16.mxu0 0
        %917 = vmatpush1.bf16.msra.mxu0 0
        %918 = vmatprep.subr.bf16.mxu0 0
        %919 = vmatpush1.bf16.msra.mxu0 0
        %920 = vmatprep.subr.bf16.mxu0 0
        %921 = vmatpush1.bf16.msra.mxu0 0
        %922 = vmatprep.subr.bf16.mxu0 0
        %923 = vmatpush1.bf16.msra.mxu0 0
        %924 = vmatprep.subr.bf16.mxu0 0
        %925 = vmatpush1.bf16.msra.mxu0 0
        %926 = vmatprep.subr.bf16.mxu0 0
        %927 = vmatpush1.bf16.msra.mxu0 0
        %928 = vmatprep.subr.bf16.mxu0 0
        %929 = vmatpush1.bf16.msra.mxu0 0
        %930 = vmatprep.mubr.bf16.mxu0 0
        %931 = vmatmul.mubr.bf16.gmra.mrb[0].mxu0 %v892
        %v932 = vpop.f32.mrb[0].mxu0
        %v933 = vadd.f32 0.0, %v932
        %v934 = vpop.f32.mrb[0].mxu0
        %v935 = vpop.f32.mrb[0].mxu0
        %v936 = vpop.f32.mrb[0].mxu0
        %937 = vdwg.mxu0
        %v938 = vpack.c.bf16 %v933, %v933
        %vm939 = vcmask 60416
        %940 = vst.msk [vmem:[#allocation2] sm:$0xf] %vm939, %v938
        %942 = vrot.lane.b32.xlu0 %v827, 120
        %v943 = vpop.permute.xlu0 %942
        %944 = vrot.lane.b32.xlu0 %v828, 120
        %v945 = vpop.permute.xlu0 %944
        %v947 = vsel %vm829, %v943, 0
        %v950 = vsel %vm829, %v945, 0
        %952 = vmatprep.subr.bf16.mxu0 0
        %953 = vmatpush1.bf16.xpose.msra.mxu0 %v950
        %954 = vmatprep.subr.bf16.mxu0 0
        %955 = vmatpush1.bf16.xpose.msra.mxu0 0
        %956 = vmatprep.subr.bf16.mxu0 0
        %957 = vmatpush1.bf16.xpose.msra.mxu0 0
        %958 = vmatprep.subr.bf16.mxu0 0
        %959 = vmatpush1.bf16.xpose.msra.mxu0 0
        %960 = vmatprep.subr.bf16.mxu0 0
        %961 = vmatpush1.bf16.xpose.msra.mxu0 0
        %962 = vmatprep.subr.bf16.mxu0 0
        %963 = vmatpush1.bf16.xpose.msra.mxu0 0
        %964 = vmatprep.subr.bf16.mxu0 0
        %965 = vmatpush1.bf16.xpose.msra.mxu0 0
        %966 = vmatprep.subr.bf16.mxu0 0
        %967 = vmatpush1.bf16.xpose.msra.mxu0 0
        %968 = vmatprep.subr.bf16.mxu0 0
        %969 = vmatpush1.bf16.xpose.msra.mxu0 0
        %970 = vmatprep.subr.bf16.mxu0 0
        %971 = vmatpush1.bf16.xpose.msra.mxu0 0
        %972 = vmatprep.subr.bf16.mxu0 0
        %973 = vmatpush1.bf16.xpose.msra.mxu0 0
        %974 = vmatprep.subr.bf16.mxu0 0
        %975 = vmatpush1.bf16.xpose.msra.mxu0 0
        %976 = vmatprep.subr.bf16.mxu0 0
        %977 = vmatpush1.bf16.xpose.msra.mxu0 0
        %978 = vmatprep.subr.bf16.mxu0 0
        %979 = vmatpush1.bf16.xpose.msra.mxu0 0
        %980 = vmatprep.subr.bf16.mxu0 0
        %981 = vmatpush1.bf16.xpose.msra.mxu0 0
        %982 = vmatprep.subr.bf16.mxu0 0
        %983 = vmatpush1.bf16.xpose.msra.mxu0 0
        %984 = vmatprep.mubr.bf16.mxu0 0
        %985 = vmatmul.mubr.bf16.gmra.mrb[0].mxu0 %v947
        %v986 = vpop.f32.mrb[0].mxu0
        %v987 = vadd.f32 %v825, %v986
        %v988 = vpop.f32.mrb[0].mxu0
        %v989 = vpop.f32.mrb[0].mxu0
        %v990 = vpop.f32.mrb[0].mxu0
        %991 = vdwg.mxu0
        %v992 = vsel %vm829, %v987, -inf
        %993 = vmax.xlane.f32.xlu0 %v992
        %v994 = vpop.xlane.xlu0 %993
        %v995 = vsub.f32 %v987, %v994
        %v996 = vmul.f32 %v995, 1.442695
        %v997 = vpow.pop %v996
        %v998 = vsel %vm829, %v997, 0.0
        %999 = vadd.xlane.f32.xlu0 %v998
        %v1000 = vpop.xlane.xlu0 %999
        %v1001 = vrcp.pop %v1000
        %v1002 = vmul.f32 %v997, %v1001
        %v1003 = vpack.c.bf16 %v1002, %v1002
        %1004 = vrot.lane.b32.xlu0 %v828, 88
        %v1005 = vpop.permute.xlu0 %1004
        %v1007 = vsel %vm829, %v1003, 0
        %v1010 = vsel %vm894, %v1005, 0
        %1012 = vmatprep.subr.bf16.mxu0 0
        %1013 = vmatpush1.bf16.msra.mxu0 %v1010
        %1014 = vmatprep.subr.bf16.mxu0 0
        %1015 = vmatpush1.bf16.msra.mxu0 0
        %1016 = vmatprep.subr.bf16.mxu0 0
        %1017 = vmatpush1.bf16.msra.mxu0 0
        %1018 = vmatprep.subr.bf16.mxu0 0
        %1019 = vmatpush1.bf16.msra.mxu0 0
        %1020 = vmatprep.subr.bf16.mxu0 0
        %1021 = vmatpush1.bf16.msra.mxu0 0
        %1022 = vmatprep.subr.bf16.mxu0 0
        %1023 = vmatpush1.bf16.msra.mxu0 0
        %1024 = vmatprep.subr.bf16.mxu0 0
        %1025 = vmatpush1.bf16.msra.mxu0 0
        %1026 = vmatprep.subr.bf16.mxu0 0
        %1027 = vmatpush1.bf16.msra.mxu0 0
        %1028 = vmatprep.subr.bf16.mxu0 0
        %1029 = vmatpush1.bf16.msra.mxu0 0
        %1030 = vmatprep.subr.bf16.mxu0 0
        %1031 = vmatpush1.bf16.msra.mxu0 0
        %1032 = vmatprep.subr.bf16.mxu0 0
        %1033 = vmatpush1.bf16.msra.mxu0 0
        %1034 = vmatprep.subr.bf16.mxu0 0
        %1035 = vmatpush1.bf16.msra.mxu0 0
        %1036 = vmatprep.subr.bf16.mxu0 0
        %1037 = vmatpush1.bf16.msra.mxu0 0
        %1038 = vmatprep.subr.bf16.mxu0 0
        %1039 = vmatpush1.bf16.msra.mxu0 0
        %1040 = vmatprep.subr.bf16.mxu0 0
        %1041 = vmatpush1.bf16.msra.mxu0 0
        %1042 = vmatprep.subr.bf16.mxu0 0
        %1043 = vmatpush1.bf16.msra.mxu0 0
        %1044 = vmatprep.mubr.bf16.mxu0 0
        %1045 = vmatmul.mubr.bf16.gmra.mrb[0].mxu0 %v1007
        %v1046 = vpop.f32.mrb[0].mxu0
        %v1047 = vadd.f32 0.0, %v1046
        %v1048 = vpop.f32.mrb[0].mxu0
        %v1049 = vpop.f32.mrb[0].mxu0
        %v1050 = vpop.f32.mrb[0].mxu0
        %1051 = vdwg.mxu0
        %v1052 = vpack.c.bf16 %v1047, %v1047
        %v1054 = vunpack.c.l.b16 %v1052
        %v1055 = vpack.c.b16 %v1054, %v1054
        %1056 = vrot.lane.b32.xlu0 %v1055, 8
        %v1057 = vpop.permute.xlu0 %1056
        %vm1059 = vcmask 126016
        %1060 = vst.msk [vmem:[#allocation2] sm:$0xf] %vm1059, %v1057
        %1061 = vrot.lane.b32.xlu0 %v827, 112
        %v1062 = vpop.permute.xlu0 %1061
        %1063 = vrot.lane.b32.xlu0 %v828, 112
        %v1064 = vpop.permute.xlu0 %1063
        %v1066 = vsel %vm829, %v1062, 0
        %v1069 = vsel %vm829, %v1064, 0
        %1071 = vmatprep.subr.bf16.mxu0 0
        %1072 = vmatpush1.bf16.xpose.msra.mxu0 %v1069
        %1073 = vmatprep.subr.bf16.mxu0 0
        %1074 = vmatpush1.bf16.xpose.msra.mxu0 0
        %1075 = vmatprep.subr.bf16.mxu0 0
        %1076 = vmatpush1.bf16.xpose.msra.mxu0 0
        %1077 = vmatprep.subr.bf16.mxu0 0
        %1078 = vmatpush1.bf16.xpose.msra.mxu0 0
        %1079 = vmatprep.subr.bf16.mxu0 0
        %1080 = vmatpush1.bf16.xpose.msra.mxu0 0
        %1081 = vmatprep.subr.bf16.mxu0 0
        %1082 = vmatpush1.bf16.xpose.msra.mxu0 0
        %1083 = vmatprep.subr.bf16.mxu0 0
        %1084 = vmatpush1.bf16.xpose.msra.mxu0 0
        %1085 = vmatprep.subr.bf16.mxu0 0
        %1086 = vmatpush1.bf16.xpose.msra.mxu0 0
        %1087 = vmatprep.subr.bf16.mxu0 0
        %1088 = vmatpush1.bf16.xpose.msra.mxu0 0
        %1089 = vmatprep.subr.bf16.mxu0 0
        %1090 = vmatpush1.bf16.xpose.msra.mxu0 0
        %1091 = vmatprep.subr.bf16.mxu0 0
        %1092 = vmatpush1.bf16.xpose.msra.mxu0 0
        %1093 = vmatprep.subr.bf16.mxu0 0
        %1094 = vmatpush1.bf16.xpose.msra.mxu0 0
        %1095 = vmatprep.subr.bf16.mxu0 0
        %1096 = vmatpush1.bf16.xpose.msra.mxu0 0
        %1097 = vmatprep.subr.bf16.mxu0 0
        %1098 = vmatpush1.bf16.xpose.msra.mxu0 0
        %1099 = vmatprep.subr.bf16.mxu0 0
        %1100 = vmatpush1.bf16.xpose.msra.mxu0 0
        %1101 = vmatprep.subr.bf16.mxu0 0
        %1102 = vmatpush1.bf16.xpose.msra.mxu0 0
        %1103 = vmatprep.mubr.bf16.mxu0 0
        %1104 = vmatmul.mubr.bf16.gmra.mrb[0].mxu0 %v1066
        %v1105 = vpop.f32.mrb[0].mxu0
        %v1106 = vadd.f32 %v825, %v1105
        %v1107 = vpop.f32.mrb[0].mxu0
        %v1108 = vpop.f32.mrb[0].mxu0
        %v1109 = vpop.f32.mrb[0].mxu0
        %1110 = vdwg.mxu0
        %v1111 = vsel %vm829, %v1106, -inf
        %1112 = vmax.xlane.f32.xlu0 %v1111
        %v1113 = vpop.xlane.xlu0 %1112
        %v1114 = vsub.f32 %v1106, %v1113
        %v1115 = vmul.f32 %v1114, 1.442695
        %v1116 = vpow.pop %v1115
        %v1117 = vsel %vm829, %v1116, 0.0
        %1118 = vadd.xlane.f32.xlu0 %v1117
        %v1119 = vpop.xlane.xlu0 %1118
        %v1120 = vrcp.pop %v1119
        %v1121 = vmul.f32 %v1116, %v1120
        %v1122 = vpack.c.bf16 %v1121, %v1121
        %1123 = vrot.lane.b32.xlu0 %v828, 80
        %v1124 = vpop.permute.xlu0 %1123
        %v1126 = vsel %vm829, %v1122, 0
        %v1129 = vsel %vm894, %v1124, 0
        %1131 = vmatprep.subr.bf16.mxu0 0
        %1132 = vmatpush1.bf16.msra.mxu0 %v1129
        %1133 = vmatprep.subr.bf16.mxu0 0
        %1134 = vmatpush1.bf16.msra.mxu0 0
        %1135 = vmatprep.subr.bf16.mxu0 0
        %1136 = vmatpush1.bf16.msra.mxu0 0
        %1137 = vmatprep.subr.bf16.mxu0 0
        %1138 = vmatpush1.bf16.msra.mxu0 0
        %1139 = vmatprep.subr.bf16.mxu0 0
        %1140 = vmatpush1.bf16.msra.mxu0 0
        %1141 = vmatprep.subr.bf16.mxu0 0
        %1142 = vmatpush1.bf16.msra.mxu0 0
        %1143 = vmatprep.subr.bf16.mxu0 0
        %1144 = vmatpush1.bf16.msra.mxu0 0
        %1145 = vmatprep.subr.bf16.mxu0 0
        %1146 = vmatpush1.bf16.msra.mxu0 0
        %1147 = vmatprep.subr.bf16.mxu0 0
        %1148 = vmatpush1.bf16.msra.mxu0 0
        %1149 = vmatprep.subr.bf16.mxu0 0
        %1150 = vmatpush1.bf16.msra.mxu0 0
        %1151 = vmatprep.subr.bf16.mxu0 0
        %1152 = vmatpush1.bf16.msra.mxu0 0
        %1153 = vmatprep.subr.bf16.mxu0 0
        %1154 = vmatpush1.bf16.msra.mxu0 0
        %1155 = vmatprep.subr.bf16.mxu0 0
        %1156 = vmatpush1.bf16.msra.mxu0 0
        %1157 = vmatprep.subr.bf16.mxu0 0
        %1158 = vmatpush1.bf16.msra.mxu0 0
        %1159 = vmatprep.subr.bf16.mxu0 0
        %1160 = vmatpush1.bf16.msra.mxu0 0
        %1161 = vmatprep.subr.bf16.mxu0 0
        %1162 = vmatpush1.bf16.msra.mxu0 0
        %1163 = vmatprep.mubr.bf16.mxu0 0
        %1164 = vmatmul.mubr.bf16.gmra.mrb[0].mxu0 %v1126
        %v1165 = vpop.f32.mrb[0].mxu0
        %v1166 = vadd.f32 0.0, %v1165
        %v1167 = vpop.f32.mrb[0].mxu0
        %v1168 = vpop.f32.mrb[0].mxu0
        %v1169 = vpop.f32.mrb[0].mxu0
        %1170 = vdwg.mxu0
        %v1171 = vpack.c.bf16 %v1166, %v1166
        %v1173 = vunpack.c.l.b16 %v1171
        %v1174 = vpack.c.b16 %v1173, %v1173
        %1175 = vrot.lane.b32.xlu0 %v1174, 16
        %v1176 = vpop.permute.xlu0 %1175
        %vm1178 = vcmask 191616
        %1179 = vst.msk [vmem:[#allocation2] sm:$0xf] %vm1178, %v1176
        %1180 = vrot.lane.b32.xlu0 %v827, 104
        %v1181 = vpop.permute.xlu0 %1180
        %1182 = vrot.lane.b32.xlu0 %v828, 104
        %v1183 = vpop.permute.xlu0 %1182
        %v1185 = vsel %vm829, %v1181, 0
        %v1188 = vsel %vm829, %v1183, 0
        %1190 = vmatprep.subr.bf16.mxu0 0
        %1191 = vmatpush1.bf16.xpose.msra.mxu0 %v1188
        %1192 = vmatprep.subr.bf16.mxu0 0
        %1193 = vmatpush1.bf16.xpose.msra.mxu0 0
        %1194 = vmatprep.subr.bf16.mxu0 0
        %1195 = vmatpush1.bf16.xpose.msra.mxu0 0
        %1196 = vmatprep.subr.bf16.mxu0 0
        %1197 = vmatpush1.bf16.xpose.msra.mxu0 0
        %1198 = vmatprep.subr.bf16.mxu0 0
        %1199 = vmatpush1.bf16.xpose.msra.mxu0 0
        %1200 = vmatprep.subr.bf16.mxu0 0
        %1201 = vmatpush1.bf16.xpose.msra.mxu0 0
        %1202 = vmatprep.subr.bf16.mxu0 0
        %1203 = vmatpush1.bf16.xpose.msra.mxu0 0
        %1204 = vmatprep.subr.bf16.mxu0 0
        %1205 = vmatpush1.bf16.xpose.msra.mxu0 0
        %1206 = vmatprep.subr.bf16.mxu0 0
        %1207 = vmatpush1.bf16.xpose.msra.mxu0 0
        %1208 = vmatprep.subr.bf16.mxu0 0
        %1209 = vmatpush1.bf16.xpose.msra.mxu0 0
        %1210 = vmatprep.subr.bf16.mxu0 0
        %1211 = vmatpush1.bf16.xpose.msra.mxu0 0
        %1212 = vmatprep.subr.bf16.mxu0 0
        %1213 = vmatpush1.bf16.xpose.msra.mxu0 0
        %1214 = vmatprep.subr.bf16.mxu0 0
        %1215 = vmatpush1.bf16.xpose.msra.mxu0 0
        %1216 = vmatprep.subr.bf16.mxu0 0
        %1217 = vmatpush1.bf16.xpose.msra.mxu0 0
        %1218 = vmatprep.subr.bf16.mxu0 0
        %1219 = vmatpush1.bf16.xpose.msra.mxu0 0
        %1220 = vmatprep.subr.bf16.mxu0 0
        %1221 = vmatpush1.bf16.xpose.msra.mxu0 0
        %1222 = vmatprep.mubr.bf16.mxu0 0
        %1223 = vmatmul.mubr.bf16.gmra.mrb[0].mxu0 %v1185
        %v1224 = vpop.f32.mrb[0].mxu0
        %v1225 = vadd.f32 %v825, %v1224
        %v1226 = vpop.f32.mrb[0].mxu0
        %v1227 = vpop.f32.mrb[0].mxu0
        %v1228 = vpop.f32.mrb[0].mxu0
        %1229 = vdwg.mxu0
        %v1230 = vsel %vm829, %v1225, -inf
        %1231 = vmax.xlane.f32.xlu0 %v1230
        %v1232 = vpop.xlane.xlu0 %1231
        %v1233 = vsub.f32 %v1225, %v1232
        %v1234 = vmul.f32 %v1233, 1.442695
        %v1235 = vpow.pop %v1234
        %v1236 = vsel %vm829, %v1235, 0.0
        %1237 = vadd.xlane.f32.xlu0 %v1236
        %v1238 = vpop.xlane.xlu0 %1237
        %v1239 = vrcp.pop %v1238
        %v1240 = vmul.f32 %v1235, %v1239
        %v1241 = vpack.c.bf16 %v1240, %v1240
        %1242 = vrot.lane.b32.xlu0 %v828, 72
        %v1243 = vpop.permute.xlu0 %1242
        %v1245 = vsel %vm829, %v1241, 0
        %v1248 = vsel %vm894, %v1243, 0
        %1250 = vmatprep.subr.bf16.mxu0 0
        %1251 = vmatpush1.bf16.msra.mxu0 %v1248
        %1252 = vmatprep.subr.bf16.mxu0 0
        %1253 = vmatpush1.bf16.msra.mxu0 0
        %1254 = vmatprep.subr.bf16.mxu0 0
        %1255 = vmatpush1.bf16.msra.mxu0 0
        %1256 = vmatprep.subr.bf16.mxu0 0
        %1257 = vmatpush1.bf16.msra.mxu0 0
        %1258 = vmatprep.subr.bf16.mxu0 0
        %1259 = vmatpush1.bf16.msra.mxu0 0
        %1260 = vmatprep.subr.bf16.mxu0 0
        %1261 = vmatpush1.bf16.msra.mxu0 0
        %1262 = vmatprep.subr.bf16.mxu0 0
        %1263 = vmatpush1.bf16.msra.mxu0 0
        %1264 = vmatprep.subr.bf16.mxu0 0
        %1265 = vmatpush1.bf16.msra.mxu0 0
        %1266 = vmatprep.subr.bf16.mxu0 0
        %1267 = vmatpush1.bf16.msra.mxu0 0
        %1268 = vmatprep.subr.bf16.mxu0 0
        %1269 = vmatpush1.bf16.msra.mxu0 0
        %1270 = vmatprep.subr.bf16.mxu0 0
        %1271 = vmatpush1.bf16.msra.mxu0 0
        %1272 = vmatprep.subr.bf16.mxu0 0
        %1273 = vmatpush1.bf16.msra.mxu0 0
        %1274 = vmatprep.subr.bf16.mxu0 0
        %1275 = vmatpush1.bf16.msra.mxu0 0
        %1276 = vmatprep.subr.bf16.mxu0 0
        %1277 = vmatpush1.bf16.msra.mxu0 0
        %1278 = vmatprep.subr.bf16.mxu0 0
        %1279 = vmatpush1.bf16.msra.mxu0 0
        %1280 = vmatprep.subr.bf16.mxu0 0
        %1281 = vmatpush1.bf16.msra.mxu0 0
        %1282 = vmatprep.mubr.bf16.mxu0 0
        %1283 = vmatmul.mubr.bf16.gmra.mrb[0].mxu0 %v1245
        %v1284 = vpop.f32.mrb[0].mxu0
        %v1285 = vadd.f32 0.0, %v1284
        %v1286 = vpop.f32.mrb[0].mxu0
        %v1287 = vpop.f32.mrb[0].mxu0
        %v1288 = vpop.f32.mrb[0].mxu0
        %1289 = vdwg.mxu0
        %v1290 = vpack.c.bf16 %v1285, %v1285
        %v1292 = vunpack.c.l.b16 %v1290
        %v1293 = vpack.c.b16 %v1292, %v1292
        %1294 = vrot.lane.b32.xlu0 %v1293, 24
        %v1295 = vpop.permute.xlu0 %1294
        %vm1297 = vcmask 257216
        %1298 = vst.msk [vmem:[#allocation2] sm:$0xf] %vm1297, %v1295
        %v1299 = vld [vmem:[#allocation2] sm:$0xf]
        %v1300 = vld [vmem:[#allocation9] sm:$0xf]
        %v1301 = vld [vmem:[#allocation9 + $0x4] sm:$0xf]
        %v1302 = vld [vmem:[#allocation9 + $0x8] sm:$0xf]
        %v1303 = vld [vmem:[#allocation9 + $0xc] sm:$0xf]
        %v1304 = vld [vmem:[#allocation11] sm:$0x1]
        %v1306 = vlaneseq
        %v1307 = vshrl.u32 %v1306, 7
        %v1308 = vsub.s32 0, %v1307
        %v1309 = vrot.slane %v1304, %v1308
        %v1315 = vunpack.c.l.b16 %v1300
        %v1316 = vunpack.c.l.b16 %v1301
        %v1317 = vunpack.c.l.b16 %v1302
        %v1318 = vunpack.c.l.b16 %v1303
        %v1319 = vpack.c.b16 %v1316, %v1315
        %v1320 = vpack.c.b16 %v1318, %v1317
        %v1324 = vsel %vm708, %v1299, 0
        %1326 = vmatprep.subr.bf16.mxu0 0
        %1327 = vmatpush1.bf16.msra.mxu0 %v1319
        %1328 = vmatprep.subr.bf16.mxu0 0
        %1329 = vmatpush1.bf16.msra.mxu0 %v1320
        %1330 = vmatprep.subr.bf16.mxu0 0
        %1331 = vmatpush1.bf16.msra.mxu0 0
        %1332 = vmatprep.subr.bf16.mxu0 0
        %1333 = vmatpush1.bf16.msra.mxu0 0
        %1334 = vmatprep.subr.bf16.mxu0 0
        %1335 = vmatpush1.bf16.msra.mxu0 0
        %1336 = vmatprep.subr.bf16.mxu0 0
        %1337 = vmatpush1.bf16.msra.mxu0 0
        %1338 = vmatprep.subr.bf16.mxu0 0
        %1339 = vmatpush1.bf16.msra.mxu0 0
        %1340 = vmatprep.subr.bf16.mxu0 0
        %1341 = vmatpush1.bf16.msra.mxu0 0
        %1342 = vmatprep.subr.bf16.mxu0 0
        %1343 = vmatpush1.bf16.msra.mxu0 0
        %1344 = vmatprep.subr.bf16.mxu0 0
        %1345 = vmatpush1.bf16.msra.mxu0 0
        %1346 = vmatprep.subr.bf16.mxu0 0
        %1347 = vmatpush1.bf16.msra.mxu0 0
        %1348 = vmatprep.subr.bf16.mxu0 0
        %1349 = vmatpush1.bf16.msra.mxu0 0
        %1350 = vmatprep.subr.bf16.mxu0 0
        %1351 = vmatpush1.bf16.msra.mxu0 0
        %1352 = vmatprep.subr.bf16.mxu0 0
        %1353 = vmatpush1.bf16.msra.mxu0 0
        %1354 = vmatprep.subr.bf16.mxu0 0
        %1355 = vmatpush1.bf16.msra.mxu0 0
        %1356 = vmatprep.subr.bf16.mxu0 0
        %1357 = vmatpush1.bf16.msra.mxu0 0
        %1358 = vmatprep.mubr.bf16.mxu0 0
        %1359 = vmatmul.mubr.bf16.gmra.mrb[0].mxu0 %v1324
        %v1360 = vpop.f32.mrb[0].mxu0
        %v1361 = vadd.f32 %v1309, %v1360
        %v1362 = vpop.f32.mrb[0].mxu0
        %v1363 = vpop.f32.mrb[0].mxu0
        %v1364 = vpop.f32.mrb[0].mxu0
        %1365 = vdwg.mxu0
        %v1366 = vadd.f32 %v681, %v1361
        %v1367 = vld [vmem:[#allocation12] sm:$0x1]
        %v1368 = vld [vmem:[%s10] sm:$0x1]
        %v1369 = vsel %vm708, %v1366, 0.0
        %1370 = vadd.xlane.f32.xlu0 %v1369
        %v1371 = vpop.xlane.xlu0 %1370
        %v1372 = vrcp.pop 32.0
        %v1373 = vmul.f32 %v1371, %v1372
        %v1374 = vsub.f32 %v1366, %v1373
        %v1375 = vmul.f32 %v1374, %v1374
        %v1376 = vsel %vm708, %v1375, 0.0
        %1377 = vadd.xlane.f32.xlu0 %v1376
        %v1378 = vpop.xlane.xlu0 %1377
        %v1379 = vmul.f32 %v1378, %v1372
        %v1380 = vadd.f32 %v1379, 1e-05
        %v1381 = vrsqrt.pop %v1380
        %v1382 = vmul.f32 %v1374, %v1381
        %v1384 = vlaneseq
        %v1385 = vshrl.u32 %v1384, 7
        %v1386 = vsub.s32 0, %v1385
        %v1387 = vrot.slane %v1367, %v1386
        %v1389 = vmul.f32 %v1382, %v1387
        %v1391 = vlaneseq
        %v1392 = vshrl.u32 %v1391, 7
        %v1393 = vsub.s32 0, %v1392
        %v1394 = vrot.slane %v1368, %v1393
        %v1396 = vadd.f32 %v1389, %v1394
        %v1397 = vpack.c.bf16 %v1396, %v1396
        %v1398 = vld [vmem:[%s11] sm:$0xf]
        %v1399 = vld [vmem:[%s11 + $0x4] sm:$0xf]
        %v1400 = vld [vmem:[%s11 + $0x8] sm:$0xf]
        %v1401 = vld [vmem:[%s11 + $0xc] sm:$0xf]
        %v1402 = vld [vmem:[%s12] sm:$0x1]
        %v1404 = vlaneseq
        %v1405 = vshrl.u32 %v1404, 7
        %v1406 = vsub.s32 0, %v1405
        %v1407 = vrot.slane %v1402, %v1406
        %v1413 = vunpack.c.l.b16 %v1398
        %v1414 = vunpack.c.l.b16 %v1399
        %v1415 = vunpack.c.l.b16 %v1400
        %v1416 = vunpack.c.l.b16 %v1401
        %v1417 = vpack.c.b16 %v1414, %v1413
        %v1418 = vpack.c.b16 %v1416, %v1415
        %v1422 = vsel %vm708, %v1397, 0
        %1424 = vmatprep.subr.bf16.mxu0 0
        %1425 = vmatpush1.bf16.msra.mxu0 %v1417
        %1426 = vmatprep.subr.bf16.mxu0 0
        %1427 = vmatpush1.bf16.msra.mxu0 %v1418
        %1428 = vmatprep.subr.bf16.mxu0 0
        %1429 = vmatpush1.bf16.msra.mxu0 0
        %1430 = vmatprep.subr.bf16.mxu0 0
        %1431 = vmatpush1.bf16.msra.mxu0 0
        %1432 = vmatprep.subr.bf16.mxu0 0
        %1433 = vmatpush1.bf16.msra.mxu0 0
        %1434 = vmatprep.subr.bf16.mxu0 0
        %1435 = vmatpush1.bf16.msra.mxu0 0
        %1436 = vmatprep.subr.bf16.mxu0 0
        %1437 = vmatpush1.bf16.msra.mxu0 0
        %1438 = vmatprep.subr.bf16.mxu0 0
        %1439 = vmatpush1.bf16.msra.mxu0 0
        %1440 = vmatprep.subr.bf16.mxu0 0
        %1441 = vmatpush1.bf16.msra.mxu0 0
        %1442 = vmatprep.subr.bf16.mxu0 0
        %1443 = vmatpush1.bf16.msra.mxu0 0
        %1444 = vmatprep.subr.bf16.mxu0 0
        %1445 = vmatpush1.bf16.msra.mxu0 0
        %1446 = vmatprep.subr.bf16.mxu0 0
        %1447 = vmatpush1.bf16.msra.mxu0 0
        %1448 = vmatprep.subr.bf16.mxu0 0
        %1449 = vmatpush1.bf16.msra.mxu0 0
        %1450 = vmatprep.subr.bf16.mxu0 0
        %1451 = vmatpush1.bf16.msra.mxu0 0
        %1452 = vmatprep.subr.bf16.mxu0 0
        %1453 = vmatpush1.bf16.msra.mxu0 0
        %1454 = vmatprep.subr.bf16.mxu0 0
        %1455 = vmatpush1.bf16.msra.mxu0 0
        %1456 = vmatprep.mubr.bf16.mxu0 0
        %1457 = vmatmul.mubr.bf16.gmra.mrb[0].mxu0 %v1422
        %v1458 = vpop.f32.mrb[0].mxu0
        %v1459 = vadd.f32 %v1407, %v1458
        %v1460 = vpop.f32.mrb[0].mxu0
        %v1461 = vpop.f32.mrb[0].mxu0
        %v1462 = vpop.f32.mrb[0].mxu0
        %1463 = vdwg.mxu0
        %v1464 = vmax.f32 %v1459, 0.0
        %v1465 = vpack.c.bf16 %v1464, %v1464
        %v1466 = vld [vmem:[%s13] sm:$0xf]
        %v1467 = vld [vmem:[%s13 + $0x4] sm:$0xf]
        %v1468 = vld [vmem:[%s13 + $0x8] sm:$0xf]
        %v1469 = vld [vmem:[%s13 + $0xc] sm:$0xf]
        %v1470 = vld [vmem:[%s13 + $0x10] sm:$0xf]
        %v1471 = vld [vmem:[%s13 + $0x14] sm:$0xf]
        %v1472 = vld [vmem:[%s13 + $0x18] sm:$0xf]
        %v1473 = vld [vmem:[%s13 + $0x1c] sm:$0xf]
        %v1474 = vld [vmem:[%s14] sm:$0x1]
        %v1476 = vlaneseq
        %v1477 = vshrl.u32 %v1476, 7
        %v1478 = vsub.s32 0, %v1477
        %v1479 = vrot.slane %v1474, %v1478
        %v1489 = vunpack.c.l.b16 %v1466
        %v1490 = vunpack.c.l.b16 %v1467
        %v1491 = vunpack.c.l.b16 %v1468
        %v1492 = vunpack.c.l.b16 %v1469
        %v1493 = vunpack.c.l.b16 %v1470
        %v1494 = vunpack.c.l.b16 %v1471
        %v1495 = vunpack.c.l.b16 %v1472
        %v1496 = vunpack.c.l.b16 %v1473
        %v1497 = vpack.c.b16 %v1490, %v1489
        %v1498 = vpack.c.b16 %v1492, %v1491
        %v1499 = vpack.c.b16 %v1494, %v1493
        %v1500 = vpack.c.b16 %v1496, %v1495
        %vm1505 = vcmask 523264
        %v1507 = vsel %vm1505, %v1465, 0
        %1509 = vmatprep.subr.bf16.mxu0 0
        %1510 = vmatpush1.bf16.msra.mxu0 %v1497
        %1511 = vmatprep.subr.bf16.mxu0 0
        %1512 = vmatpush1.bf16.msra.mxu0 %v1498
        %1513 = vmatprep.subr.bf16.mxu0 0
        %1514 = vmatpush1.bf16.msra.mxu0 %v1499
        %1515 = vmatprep.subr.bf16.mxu0 0
        %1516 = vmatpush1.bf16.msra.mxu0 %v1500
        %1517 = vmatprep.subr.bf16.mxu0 0
        %1518 = vmatpush1.bf16.msra.mxu0 0
        %1519 = vmatprep.subr.bf16.mxu0 0
        %1520 = vmatpush1.bf16.msra.mxu0 0
        %1521 = vmatprep.subr.bf16.mxu0 0
        %1522 = vmatpush1.bf16.msra.mxu0 0
        %1523 = vmatprep.subr.bf16.mxu0 0
        %1524 = vmatpush1.bf16.msra.mxu0 0
        %1525 = vmatprep.subr.bf16.mxu0 0
        %1526 = vmatpush1.bf16.msra.mxu0 0
        %1527 = vmatprep.subr.bf16.mxu0 0
        %1528 = vmatpush1.bf16.msra.mxu0 0
        %1529 = vmatprep.subr.bf16.mxu0 0
        %1530 = vmatpush1.bf16.msra.mxu0 0
        %1531 = vmatprep.subr.bf16.mxu0 0
        %1532 = vmatpush1.bf16.msra.mxu0 0
        %1533 = vmatprep.subr.bf16.mxu0 0
        %1534 = vmatpush1.bf16.msra.mxu0 0
        %1535 = vmatprep.subr.bf16.mxu0 0
        %1536 = vmatpush1.bf16.msra.mxu0 0
        %1537 = vmatprep.subr.bf16.mxu0 0
        %1538 = vmatpush1.bf16.msra.mxu0 0
        %1539 = vmatprep.subr.bf16.mxu0 0
        %1540 = vmatpush1.bf16.msra.mxu0 0
        %1541 = vmatprep.mubr.bf16.mxu0 0
        %1542 = vmatmul.mubr.bf16.gmra.mrb[0].mxu0 %v1507
        %v1543 = vpop.f32.mrb[0].mxu0
        %v1544 = vadd.f32 %v1479, %v1543
        %v1545 = vpop.f32.mrb[0].mxu0
        %v1546 = vpop.f32.mrb[0].mxu0
        %v1547 = vpop.f32.mrb[0].mxu0
        %1548 = vdwg.mxu0
        %v1549 = vadd.f32 %v1396, %v1544
        %v1550 = vld [vmem:[%s15] sm:$0x1]
        %v1551 = vld [vmem:[%s16] sm:$0x1]
        %v1552 = vsel %vm708, %v1549, 0.0
        %1553 = vadd.xlane.f32.xlu0 %v1552
        %v1554 = vpop.xlane.xlu0 %1553
        %v1555 = vmul.f32 %v1554, %v1372
        %v1556 = vsub.f32 %v1549, %v1555
        %v1557 = vmul.f32 %v1556, %v1556
        %v1558 = vsel %vm708, %v1557, 0.0
        %1559 = vadd.xlane.f32.xlu0 %v1558
        %v1560 = vpop.xlane.xlu0 %1559
        %v1561 = vmul.f32 %v1560, %v1372
        %v1562 = vadd.f32 %v1561, 1e-05
        %v1563 = vrsqrt.pop %v1562
        %v1564 = vmul.f32 %v1556, %v1563
        %v1566 = vlaneseq
        %v1567 = vshrl.u32 %v1566, 7
        %v1568 = vsub.s32 0, %v1567
        %v1569 = vrot.slane %v1550, %v1568
        %v1571 = vmul.f32 %v1564, %v1569
        %v1573 = vlaneseq
        %v1574 = vshrl.u32 %v1573, 7
        %v1575 = vsub.s32 0, %v1574
        %v1576 = vrot.slane %v1551, %v1575
        %v1578 = vadd.f32 %v1571, %v1576
        %1579 = vst.msk [vmem:[%s665] sm:$0xff] %vm708, %v1578
        %s1580 = sand.u32 %s431, 1
        %s1581 = scalar_lea.sflag [#allocation5], %s1580
        %s1582 = sand.u32 %s431, 1
        %s1583 = smul.addr %s1582, 8
        %s1584 = scalar_lea.vmem [#allocation14], %s1583
        // Predicated region
        $region113: #{tpu_custom_call.1} parent=87 // pred_check
          %p1585 = pneg %p441
        $region114: #{tpu_custom_call.1} parent=87 // pred_check_branch
          %1587 = sbr.rel (%p1585) target = $region116
        $region115: #{tpu_custom_call.1} parent=87 // pred_region
          %s1589 = ssub.s32 128, 128
          %1590 = vsyncadd %s1581, %s1589
          %s1591 = sadd.s32 %s40, %s39
          %s1592 = smul.addr %s1591, 128
          %s1593 = scalar_lea.hbm %s17, %s1592
          %s1595 = sshll.u32 %s1584, 4
          %s1596 = int_to_ptr.vmem [resolvable:$true] %s1595
          %1598 = dma.vmem_to_hbm [thread:$0]  %s1596, 128, %s1593, %s1581
        $region116: #{tpu_custom_call.1} parent=87 // pred_fallthru
          _
      $region88: #{tpu_custom_call.1} parent=5 // pred_fallthru
        _
      %p1599 = scmp.le.s32.totalorder 2, %s30
      // Predicated region
      $region117: #{tpu_custom_call.1} parent=5 // pred_check
        %p1600 = pneg %p1599
      $region118: #{tpu_custom_call.1} parent=5 // pred_check_branch
        %1602 = sbr.rel (%p1600) target = $region120
      $region119: #{tpu_custom_call.1} parent=5 // pred_region
        %s1603 = ssub.s32 %s30, 2
        // Predicated region
        $region121: #{tpu_custom_call.1} parent=119 // pred_check
          %p1604 = pneg %p447
        $region122: #{tpu_custom_call.1} parent=119 // pred_check_branch
          %1606 = sbr.rel (%p1604) target = $region124
        $region123: #{tpu_custom_call.1} parent=119 // pred_region
          %s1607 = sand.u32 %s432, 1
          %s1608 = scalar_lea.sflag [#allocation5], %s1607
          %s1609 = sand.u32 %s432, 1
          %s1610 = smul.addr %s1609, 8
          %s1611 = scalar_lea.vmem [#allocation14], %s1610
          %1612 = dma.done %s1608, 128
        $region124: #{tpu_custom_call.1} parent=119 // pred_fallthru
          _
      $region120: #{tpu_custom_call.1} parent=5 // pred_fallthru
        _
    $region6: #{tpu_custom_call.1} parent=1 // loop_footer
      %s34 = sadd.s32 1, %s30
    $region7: #{tpu_custom_call.1} parent=1 // loop_footer_branch
      %29 = sbr.rel target = $region3
    $region8: #{tpu_custom_call.1} parent=1 // loop_exit
      _
    %1613 = vsyncpa [#allocation4], 1
    %s1614 = scalar_lea.sflag [#allocation4], 1
    %1615 = vsyncpa %s1614, 1
    %1616 = vsyncpa [#allocation7], 1
    %1617 = vsyncpa [#allocation10], 1
    %1618 = vsyncpa [#allocation13], 1
    %1619 = vsyncpa [#allocation5], 1
    %s1620 = scalar_lea.sflag [#allocation5], 1
    %1621 = vsyncpa %s1620, 1

</llo_original>
